<compile_context>
chip_gen: v5e
topology: v5e:2x2
jax: 0.10.0
libtpu: 0.0.40
codegen_flags: <defaults>
</compile_context>

<pallas_src>
import functools

import jax
import jax.numpy as jnp
from jax.experimental import pallas as pl
from jax.experimental.pallas import tpu as pltpu

# ----------------------------- configuration (module defaults) ----------------
B = 2                 # batch
S_LEN = 64            # seq_len (number of graph nodes)
NODE_FEATS = 4        # GAT(node_feats=4)
OUT_FEATURES = 96     # GAT(out_features=96)
NUM_GCN_LAYERS = 2    # GAT(num_gcn_layers=2)
ACTIVATION = False    # GAT(activation=False)
N_EDGE_FEATS = 3      # edge carries several channels; forward only uses channel 0
ALPHA = 1e-2          # GraphAttention LeakyReLU negative slope (repo default)
THRESH = 1e-6         # GraphAttention interaction threshold (graph_lap=True masking)
MASK_FILL = -9e15     # fill value for non-edges before softmax (as in pyGAT)


def _full_spec(shape):
    nd = len(shape)
    return pl.BlockSpec(tuple(shape), lambda *_: (0,) * nd)


# ------------------------------- fused GAT kernel -----------------------------
def _gat_fused_kernel(x_ref, adj_ref, w0_ref, a0_ref, ws_ref, as_ref, o_ref, hbuf,
                      *, nbatch, seq, n_layers, alpha, thresh, activation):
    """Whole GAT forward (all GraphAttention layers, full batch) in one kernel.

    x_ref   : (B*S, F_in)        node features, batch folded into rows
    adj_ref : (B, S, S)          graph Laplacian (edge[..., 0])
    w0_ref  : (F_in, F)          layer-0 weight W
    a0_ref  : (F, 2)             layer-0 attention vector; columns = [a[:F], a[F:]]
    ws_ref  : (L-1, F, F)        weights of layers 1..L-1
    as_ref  : (L-1, F, 2)        attention vectors of layers 1..L-1
    o_ref   : (B*S, F)           output
    hbuf    : (B*S, F) f32 VMEM  inter-layer activation (stays on-chip)
    """
    f32 = jnp.float32
    mm = lambda p, q: jnp.dot(p, q, preferred_element_type=f32)

    # adjacency masks are layer-invariant: compute once, reuse for every layer
    masks = [jnp.abs(adj_ref[b].astype(f32)) > thresh for b in range(nbatch)]

    def graph_attention(h_in, w, a, dst_ref):
        # Dense projections batch-fused: M = B*S rows.
        h = mm(h_in, w)                       # (B*S, F)
        f = mm(h, a)                          # (B*S, 2): col0 = h@a[:F], col1 = h@a[F:]
        for b in range(nbatch):               # tiny unrolled loop; attention is per-graph
            r0 = b * seq
            hb = h[r0:r0 + seq, :]            # (S, F)
            fb = f[r0:r0 + seq, :]            # (S, 2)
            # e_ij = a1.h_i + a2.h_j  ==  a^T [h_i || h_j]   (pairwise concat decomposed)
            e = fb[:, 0:1] + fb[:, 1:2].T     # (S, S)
            e = jnp.where(e >= 0.0, e, alpha * e)            # LeakyReLU(alpha)
            e = jnp.where(masks[b], e, MASK_FILL)            # graph-Laplacian mask
            e = e - jnp.max(e, axis=-1, keepdims=True)       # stable softmax over neighbors
            p = jnp.exp(e)
            p = p / jnp.sum(p, axis=-1, keepdims=True)
            # attention dropout is identity at inference
            dst_ref[r0:r0 + seq, :] = mm(p, hb).astype(dst_ref.dtype)

    last = n_layers - 1  # n_layers >= 2 (asserted by the wrapper)

    # ---- layer 0: F_in -> F ----
    graph_attention(x_ref[...].astype(f32), w0_ref[...].astype(f32),
                    a0_ref[...].astype(f32), hbuf)

    # ---- layers 1 .. L-1: F -> F (ReLU only after intermediate layers when activation=True) --
    for l in range(last):
        h_prev = hbuf[...]
        if activation and l > 0:
            h_prev = jnp.maximum(h_prev, 0.0)
        dst = o_ref if l == last - 1 else hbuf
        graph_attention(h_prev, ws_ref[l].astype(f32), as_ref[l].astype(f32), dst)


# ------------------------------ wrapper ---------------------------------------
def gat_forward(params, x, edge, *, alpha=ALPHA, thresh=THRESH, activation=ACTIVATION):
    """GAT.forward(x, edge): x (B, S, F_in), edge (B, S, S, E) -> (B, S, F_out)."""
    bsz, seq, fin = x.shape
    adj = edge[..., 0]                        # graph Laplacian channel, as in the reference
    fout = params["w0"].shape[1]
    n_layers = 1 + params["w_rest"].shape[0]
    assert n_layers >= 2

    x2d = x.reshape(bsz * seq, fin)
    kernel = functools.partial(
        _gat_fused_kernel, nbatch=bsz, seq=seq, n_layers=n_layers,
        alpha=alpha, thresh=thresh, activation=activation)

    out2d = pl.pallas_call(
        kernel,
        out_shape=jax.ShapeDtypeStruct((bsz * seq, fout), jnp.float32),
        grid=(1,),
        in_specs=[_full_spec(x2d.shape), _full_spec(adj.shape),
                  _full_spec(params["w0"].shape), _full_spec(params["a0"].shape),
                  _full_spec(params["w_rest"].shape), _full_spec(params["a_rest"].shape)],
        out_specs=_full_spec((bsz * seq, fout)),
        scratch_shapes=[pltpu.VMEM((bsz * seq, fout), jnp.float32)],
        compiler_params=pltpu.CompilerParams(dimension_semantics=("arbitrary",)),
    )(x2d, adj, params["w0"], params["a0"], params["w_rest"], params["a_rest"])
    return out2d.reshape(bsz, seq, fout)


# ------------------------------ deterministic init ----------------------------
def init_params(key, node_feats=NODE_FEATS, out_features=OUT_FEATURES,
                num_layers=NUM_GCN_LAYERS, gain=1e-2):
    """GraphAttention params: W (in, out), a (2*out, 1) stored as (out, 2) columns."""
    def xavier(k, shape):
        bound = gain * (6.0 / (shape[0] + shape[1])) ** 0.5
        return jax.random.uniform(k, shape, jnp.float32, -bound, bound)

    def attn_vec(k, f):
        a = xavier(k, (2 * f, 1))                       # torch layout: (2*out_features, 1)
        return a.reshape(2, f).T                        # -> (F, 2): col0 = a[:F], col1 = a[F:]

    keys = jax.random.split(key, 2 * num_layers)
    params = {
        "w0": xavier(keys[0], (node_feats, out_features)),
        "a0": attn_vec(keys[1], out_features),
    }
    w_rest, a_rest = [], []
    for l in range(1, num_layers):
        w_rest.append(xavier(keys[2 * l], (out_features, out_features)))
        a_rest.append(attn_vec(keys[2 * l + 1], out_features))
    params["w_rest"] = jnp.stack(w_rest, axis=0)        # (L-1, F, F)
    params["a_rest"] = jnp.stack(a_rest, axis=0)        # (L-1, F, 2)
    return params


# ----------------------------------- main --------------------------------------
if __name__ == "__main__":
    key = jax.random.PRNGKey(0)
    k_x, k_e, k_p = jax.random.split(key, 3)

    # node features: (B, seq_len, node_feats)
    x = jax.random.normal(k_x, (B, S_LEN, NODE_FEATS), dtype=jnp.float32)

    # edge: (B, seq_len, seq_len, E); channel 0 = graph Laplacian of a ring graph
    idx = jnp.arange(S_LEN)
    d = jnp.abs(idx[:, None] - idx[None, :])
    ring = ((d == 1) | (d == S_LEN - 1)).astype(jnp.float32)
    lap = jnp.diag(ring.sum(axis=-1)) - ring
    edge = jnp.zeros((B, S_LEN, S_LEN, N_EDGE_FEATS), jnp.float32)
    edge = edge.at[..., 0].set(lap)
    edge = edge.at[..., 1].set(ring)
    edge = edge.at[..., 2].set(0.1 * jax.random.normal(k_e, (B, S_LEN, S_LEN)))

    params = init_params(k_p)

    out = jax.block_until_ready(gat_forward(params, x, edge))
    assert out.shape == (B, S_LEN, OUT_FEATURES), out.shape
    assert out.dtype == jnp.float32
    assert bool(jnp.all(jnp.isfinite(out)))
    print("KERNEL_OK")
</pallas_src>

<mosaic_0001>
module attributes {stable_mosaic.version = 11 : i64} {
  func.func @_gat_fused_kernel(%arg0: i32, %arg1: memref<128x4xf32, #tpu.memory_space<vmem>>, %arg2: memref<2x64x64xf32, #tpu.memory_space<vmem>>, %arg3: memref<4x96xf32, #tpu.memory_space<vmem>>, %arg4: memref<96x2xf32, #tpu.memory_space<vmem>>, %arg5: memref<1x96x96xf32, #tpu.memory_space<vmem>>, %arg6: memref<1x96x2xf32, #tpu.memory_space<vmem>>, %arg7: memref<128x96xf32, #tpu.memory_space<vmem>>, %arg8: memref<128x96xf32, #tpu.memory_space<vmem>>) attributes {dimension_semantics = [#tpu.dimension_semantics<arbitrary>], iteration_bounds = array<i64: 1>, scalar_prefetch = 0 : i64, scratch_operands = 1 : i64, tpu.core_type = #tpu.core_type<tc>, window_params = [{pipeline_mode = #tpu.pipeline_mode<synchronous>, transform_indices = @transform_0, window_bounds = array<i64: 128, 4>}, {pipeline_mode = #tpu.pipeline_mode<synchronous>, transform_indices = @transform_1, window_bounds = array<i64: 2, 64, 64>}, {pipeline_mode = #tpu.pipeline_mode<synchronous>, transform_indices = @transform_2, window_bounds = array<i64: 4, 96>}, {pipeline_mode = #tpu.pipeline_mode<synchronous>, transform_indices = @transform_3, window_bounds = array<i64: 96, 2>}, {pipeline_mode = #tpu.pipeline_mode<synchronous>, transform_indices = @transform_4, window_bounds = array<i64: 1, 96, 96>}, {pipeline_mode = #tpu.pipeline_mode<synchronous>, transform_indices = @transform_5, window_bounds = array<i64: 1, 96, 2>}, {pipeline_mode = #tpu.pipeline_mode<synchronous>, transform_indices = @transform_6, window_bounds = array<i64: 128, 96>}]} {
    %c0 = arith.constant 0 : index
    %c0_0 = arith.constant 0 : index
    %c0_1 = arith.constant 0 : index
    %0 = vector.load %arg2[%c0, %c0_0, %c0_1] : memref<2x64x64xf32, #tpu.memory_space<vmem>>, vector<1x64x64xf32>
    %1 = vector.shape_cast %0 : vector<1x64x64xf32> to vector<64x64xf32>
    %2 = math.absf %1 : vector<64x64xf32>
    %cst = arith.constant 9.99999997E-7 : f32
    %3 = vector.broadcast %cst : f32 to vector<64x64xf32>
    %4 = arith.cmpf ogt, %2, %3 : vector<64x64xf32>
    %c1 = arith.constant 1 : index
    %c0_2 = arith.constant 0 : index
    %c0_3 = arith.constant 0 : index
    %5 = vector.load %arg2[%c1, %c0_2, %c0_3] : memref<2x64x64xf32, #tpu.memory_space<vmem>>, vector<1x64x64xf32>
    %6 = vector.shape_cast %5 : vector<1x64x64xf32> to vector<64x64xf32>
    %7 = math.absf %6 : vector<64x64xf32>
    %cst_4 = arith.constant 9.99999997E-7 : f32
    %8 = vector.broadcast %cst_4 : f32 to vector<64x64xf32>
    %9 = arith.cmpf ogt, %7, %8 : vector<64x64xf32>
    %c0_5 = arith.constant 0 : index
    %c0_6 = arith.constant 0 : index
    %10 = vector.load %arg1[%c0_5, %c0_6] : memref<128x4xf32, #tpu.memory_space<vmem>>, vector<128x4xf32>
    %c0_7 = arith.constant 0 : index
    %c0_8 = arith.constant 0 : index
    %11 = vector.load %arg3[%c0_7, %c0_8] : memref<4x96xf32, #tpu.memory_space<vmem>>, vector<4x96xf32>
    %c0_9 = arith.constant 0 : index
    %c0_10 = arith.constant 0 : index
    %12 = vector.load %arg4[%c0_9, %c0_10] : memref<96x2xf32, #tpu.memory_space<vmem>>, vector<96x2xf32>
    %cst_11 = arith.constant dense<0.000000e+00> : vector<128x96xf32>
    %13 = tpu.matmul %10, %11, %cst_11 {dimension_numbers = #tpu.dot_dimension_numbers<[1], [0], [0], [1], [0, 0, 1, 1], [], []>} : vector<128x4xf32>, vector<4x96xf32>, vector<128x96xf32> -> vector<128x96xf32>
    %cst_12 = arith.constant dense<0.000000e+00> : vector<128x2xf32>
    %14 = tpu.matmul %13, %12, %cst_12 {dimension_numbers = #tpu.dot_dimension_numbers<[1], [0], [0], [1], [0, 0, 1, 1], [], []>} : vector<128x96xf32>, vector<96x2xf32>, vector<128x2xf32> -> vector<128x2xf32>
    %15 = vector.extract_strided_slice %13 {offsets = [0, 0], sizes = [64, 96], strides = [1, 1]} : vector<128x96xf32> to vector<64x96xf32>
    %16 = vector.extract_strided_slice %14 {offsets = [0, 0], sizes = [64, 2], strides = [1, 1]} : vector<128x2xf32> to vector<64x2xf32>
    %17 = vector.extract_strided_slice %16 {offsets = [0, 0], sizes = [64, 1], strides = [1, 1]} : vector<64x2xf32> to vector<64x1xf32>
    %18 = vector.extract_strided_slice %16 {offsets = [0, 1], sizes = [64, 1], strides = [1, 1]} : vector<64x2xf32> to vector<64x1xf32>
    %19 = tpu.transpose %18, [1, 0] : vector<64x1xf32> -> vector<1x64xf32>
    %20 = vector.broadcast %17 : vector<64x1xf32> to vector<64x64xf32>
    %21 = vector.broadcast %19 : vector<1x64xf32> to vector<64x64xf32>
    %22 = arith.addf %20, %21 : vector<64x64xf32>
    %cst_13 = arith.constant 0.000000e+00 : f32
    %23 = vector.broadcast %cst_13 : f32 to vector<64x64xf32>
    %24 = arith.cmpf oge, %22, %23 : vector<64x64xf32>
    %cst_14 = arith.constant 0.00999999977 : f32
    %25 = vector.broadcast %cst_14 : f32 to vector<64x64xf32>
    %26 = arith.mulf %25, %22 : vector<64x64xf32>
    %27 = arith.select %24, %22, %26 : vector<64x64xi1>, vector<64x64xf32>
    %cst_15 = arith.constant -9.000000e+15 : f32
    %28 = vector.broadcast %cst_15 : f32 to vector<64x64xf32>
    %29 = arith.select %4, %27, %28 : vector<64x64xi1>, vector<64x64xf32>
    %cst_16 = arith.constant dense<0xFF800000> : vector<64xf32>
    %30 = vector.multi_reduction <maximumf>, %29, %cst_16 [1] : vector<64x64xf32> to vector<64xf32>
    %31 = vector.shape_cast %30 : vector<64xf32> to vector<64x1xf32>
    %32 = vector.broadcast %31 : vector<64x1xf32> to vector<64x64xf32>
    %33 = arith.subf %29, %32 : vector<64x64xf32>
    %34 = math.exp %33 : vector<64x64xf32>
    %cst_17 = arith.constant dense<0.000000e+00> : vector<64xf32>
    %35 = vector.multi_reduction <add>, %34, %cst_17 [1] : vector<64x64xf32> to vector<64xf32>
    %36 = vector.shape_cast %35 : vector<64xf32> to vector<64x1xf32>
    %37 = vector.broadcast %36 : vector<64x1xf32> to vector<64x64xf32>
    %38 = arith.divf %34, %37 : vector<64x64xf32>
    %cst_18 = arith.constant dense<0.000000e+00> : vector<64x96xf32>
    %39 = tpu.matmul %38, %15, %cst_18 {dimension_numbers = #tpu.dot_dimension_numbers<[1], [0], [0], [1], [0, 0, 1, 1], [], []>} : vector<64x64xf32>, vector<64x96xf32>, vector<64x96xf32> -> vector<64x96xf32>
    %c0_19 = arith.constant 0 : index
    %c0_20 = arith.constant 0 : index
    %40 = vector.load %arg8[%c0_19, %c0_20] : memref<128x96xf32, #tpu.memory_space<vmem>>, vector<64x96xf32>
    tpu.vector_store %arg8[%c0_19, %c0_20], %39 {strides = array<i32>} : memref<128x96xf32, #tpu.memory_space<vmem>>, vector<64x96xf32>,
    %41 = vector.extract_strided_slice %13 {offsets = [64, 0], sizes = [64, 96], strides = [1, 1]} : vector<128x96xf32> to vector<64x96xf32>
    %42 = vector.extract_strided_slice %14 {offsets = [64, 0], sizes = [64, 2], strides = [1, 1]} : vector<128x2xf32> to vector<64x2xf32>
    %43 = vector.extract_strided_slice %42 {offsets = [0, 0], sizes = [64, 1], strides = [1, 1]} : vector<64x2xf32> to vector<64x1xf32>
    %44 = vector.extract_strided_slice %42 {offsets = [0, 1], sizes = [64, 1], strides = [1, 1]} : vector<64x2xf32> to vector<64x1xf32>
    %45 = tpu.transpose %44, [1, 0] : vector<64x1xf32> -> vector<1x64xf32>
    %46 = vector.broadcast %43 : vector<64x1xf32> to vector<64x64xf32>
    %47 = vector.broadcast %45 : vector<1x64xf32> to vector<64x64xf32>
    %48 = arith.addf %46, %47 : vector<64x64xf32>
    %cst_21 = arith.constant 0.000000e+00 : f32
    %49 = vector.broadcast %cst_21 : f32 to vector<64x64xf32>
    %50 = arith.cmpf oge, %48, %49 : vector<64x64xf32>
    %cst_22 = arith.constant 0.00999999977 : f32
    %51 = vector.broadcast %cst_22 : f32 to vector<64x64xf32>
    %52 = arith.mulf %51, %48 : vector<64x64xf32>
    %53 = arith.select %50, %48, %52 : vector<64x64xi1>, vector<64x64xf32>
    %cst_23 = arith.constant -9.000000e+15 : f32
    %54 = vector.broadcast %cst_23 : f32 to vector<64x64xf32>
    %55 = arith.select %9, %53, %54 : vector<64x64xi1>, vector<64x64xf32>
    %cst_24 = arith.constant dense<0xFF800000> : vector<64xf32>
    %56 = vector.multi_reduction <maximumf>, %55, %cst_24 [1] : vector<64x64xf32> to vector<64xf32>
    %57 = vector.shape_cast %56 : vector<64xf32> to vector<64x1xf32>
    %58 = vector.broadcast %57 : vector<64x1xf32> to vector<64x64xf32>
    %59 = arith.subf %55, %58 : vector<64x64xf32>
    %60 = math.exp %59 : vector<64x64xf32>
    %cst_25 = arith.constant dense<0.000000e+00> : vector<64xf32>
    %61 = vector.multi_reduction <add>, %60, %cst_25 [1] : vector<64x64xf32> to vector<64xf32>
    %62 = vector.shape_cast %61 : vector<64xf32> to vector<64x1xf32>
    %63 = vector.broadcast %62 : vector<64x1xf32> to vector<64x64xf32>
    %64 = arith.divf %60, %63 : vector<64x64xf32>
    %cst_26 = arith.constant dense<0.000000e+00> : vector<64x96xf32>
    %65 = tpu.matmul %64, %41, %cst_26 {dimension_numbers = #tpu.dot_dimension_numbers<[1], [0], [0], [1], [0, 0, 1, 1], [], []>} : vector<64x64xf32>, vector<64x96xf32>, vector<64x96xf32> -> vector<64x96xf32>
    %c64 = arith.constant 64 : index
    %c0_27 = arith.constant 0 : index
    %66 = vector.load %arg8[%c64, %c0_27] : memref<128x96xf32, #tpu.memory_space<vmem>>, vector<64x96xf32>
    tpu.vector_store %arg8[%c64, %c0_27], %65 {strides = array<i32>} : memref<128x96xf32, #tpu.memory_space<vmem>>, vector<64x96xf32>,
    %c0_28 = arith.constant 0 : index
    %c0_29 = arith.constant 0 : index
    %67 = vector.load %arg8[%c0_28, %c0_29] : memref<128x96xf32, #tpu.memory_space<vmem>>, vector<128x96xf32>
    %c0_30 = arith.constant 0 : index
    %c0_31 = arith.constant 0 : index
    %c0_32 = arith.constant 0 : index
    %68 = vector.load %arg5[%c0_30, %c0_31, %c0_32] : memref<1x96x96xf32, #tpu.memory_space<vmem>>, vector<1x96x96xf32>
    %69 = vector.shape_cast %68 : vector<1x96x96xf32> to vector<96x96xf32>
    %c0_33 = arith.constant 0 : index
    %c0_34 = arith.constant 0 : index
    %c0_35 = arith.constant 0 : index
    %70 = vector.load %arg6[%c0_33, %c0_34, %c0_35] : memref<1x96x2xf32, #tpu.memory_space<vmem>>, vector<1x96x2xf32>
    %71 = vector.shape_cast %70 : vector<1x96x2xf32> to vector<96x2xf32>
    %cst_36 = arith.constant dense<0.000000e+00> : vector<128x96xf32>
    %72 = tpu.matmul %67, %69, %cst_36 {dimension_numbers = #tpu.dot_dimension_numbers<[1], [0], [0], [1], [0, 0, 1, 1], [], []>} : vector<128x96xf32>, vector<96x96xf32>, vector<128x96xf32> -> vector<128x96xf32>
    %cst_37 = arith.constant dense<0.000000e+00> : vector<128x2xf32>
    %73 = tpu.matmul %72, %71, %cst_37 {dimension_numbers = #tpu.dot_dimension_numbers<[1], [0], [0], [1], [0, 0, 1, 1], [], []>} : vector<128x96xf32>, vector<96x2xf32>, vector<128x2xf32> -> vector<128x2xf32>
    %74 = vector.extract_strided_slice %72 {offsets = [0, 0], sizes = [64, 96], strides = [1, 1]} : vector<128x96xf32> to vector<64x96xf32>
    %75 = vector.extract_strided_slice %73 {offsets = [0, 0], sizes = [64, 2], strides = [1, 1]} : vector<128x2xf32> to vector<64x2xf32>
    %76 = vector.extract_strided_slice %75 {offsets = [0, 0], sizes = [64, 1], strides = [1, 1]} : vector<64x2xf32> to vector<64x1xf32>
    %77 = vector.extract_strided_slice %75 {offsets = [0, 1], sizes = [64, 1], strides = [1, 1]} : vector<64x2xf32> to vector<64x1xf32>
    %78 = tpu.transpose %77, [1, 0] : vector<64x1xf32> -> vector<1x64xf32>
    %79 = vector.broadcast %76 : vector<64x1xf32> to vector<64x64xf32>
    %80 = vector.broadcast %78 : vector<1x64xf32> to vector<64x64xf32>
    %81 = arith.addf %79, %80 : vector<64x64xf32>
    %cst_38 = arith.constant 0.000000e+00 : f32
    %82 = vector.broadcast %cst_38 : f32 to vector<64x64xf32>
    %83 = arith.cmpf oge, %81, %82 : vector<64x64xf32>
    %cst_39 = arith.constant 0.00999999977 : f32
    %84 = vector.broadcast %cst_39 : f32 to vector<64x64xf32>
    %85 = arith.mulf %84, %81 : vector<64x64xf32>
    %86 = arith.select %83, %81, %85 : vector<64x64xi1>, vector<64x64xf32>
    %cst_40 = arith.constant -9.000000e+15 : f32
    %87 = vector.broadcast %cst_40 : f32 to vector<64x64xf32>
    %88 = arith.select %4, %86, %87 : vector<64x64xi1>, vector<64x64xf32>
    %cst_41 = arith.constant dense<0xFF800000> : vector<64xf32>
    %89 = vector.multi_reduction <maximumf>, %88, %cst_41 [1] : vector<64x64xf32> to vector<64xf32>
    %90 = vector.shape_cast %89 : vector<64xf32> to vector<64x1xf32>
    %91 = vector.broadcast %90 : vector<64x1xf32> to vector<64x64xf32>
    %92 = arith.subf %88, %91 : vector<64x64xf32>
    %93 = math.exp %92 : vector<64x64xf32>
    %cst_42 = arith.constant dense<0.000000e+00> : vector<64xf32>
    %94 = vector.multi_reduction <add>, %93, %cst_42 [1] : vector<64x64xf32> to vector<64xf32>
    %95 = vector.shape_cast %94 : vector<64xf32> to vector<64x1xf32>
    %96 = vector.broadcast %95 : vector<64x1xf32> to vector<64x64xf32>
    %97 = arith.divf %93, %96 : vector<64x64xf32>
    %cst_43 = arith.constant dense<0.000000e+00> : vector<64x96xf32>
    %98 = tpu.matmul %97, %74, %cst_43 {dimension_numbers = #tpu.dot_dimension_numbers<[1], [0], [0], [1], [0, 0, 1, 1], [], []>} : vector<64x64xf32>, vector<64x96xf32>, vector<64x96xf32> -> vector<64x96xf32>
    %c0_44 = arith.constant 0 : index
    %c0_45 = arith.constant 0 : index
    %99 = vector.load %arg7[%c0_44, %c0_45] : memref<128x96xf32, #tpu.memory_space<vmem>>, vector<64x96xf32>
    tpu.vector_store %arg7[%c0_44, %c0_45], %98 {strides = array<i32>} : memref<128x96xf32, #tpu.memory_space<vmem>>, vector<64x96xf32>,
    %100 = vector.extract_strided_slice %72 {offsets = [64, 0], sizes = [64, 96], strides = [1, 1]} : vector<128x96xf32> to vector<64x96xf32>
    %101 = vector.extract_strided_slice %73 {offsets = [64, 0], sizes = [64, 2], strides = [1, 1]} : vector<128x2xf32> to vector<64x2xf32>
    %102 = vector.extract_strided_slice %101 {offsets = [0, 0], sizes = [64, 1], strides = [1, 1]} : vector<64x2xf32> to vector<64x1xf32>
    %103 = vector.extract_strided_slice %101 {offsets = [0, 1], sizes = [64, 1], strides = [1, 1]} : vector<64x2xf32> to vector<64x1xf32>
    %104 = tpu.transpose %103, [1, 0] : vector<64x1xf32> -> vector<1x64xf32>
    %105 = vector.broadcast %102 : vector<64x1xf32> to vector<64x64xf32>
    %106 = vector.broadcast %104 : vector<1x64xf32> to vector<64x64xf32>
    %107 = arith.addf %105, %106 : vector<64x64xf32>
    %cst_46 = arith.constant 0.000000e+00 : f32
    %108 = vector.broadcast %cst_46 : f32 to vector<64x64xf32>
    %109 = arith.cmpf oge, %107, %108 : vector<64x64xf32>
    %cst_47 = arith.constant 0.00999999977 : f32
    %110 = vector.broadcast %cst_47 : f32 to vector<64x64xf32>
    %111 = arith.mulf %110, %107 : vector<64x64xf32>
    %112 = arith.select %109, %107, %111 : vector<64x64xi1>, vector<64x64xf32>
    %cst_48 = arith.constant -9.000000e+15 : f32
    %113 = vector.broadcast %cst_48 : f32 to vector<64x64xf32>
    %114 = arith.select %9, %112, %113 : vector<64x64xi1>, vector<64x64xf32>
    %cst_49 = arith.constant dense<0xFF800000> : vector<64xf32>
    %115 = vector.multi_reduction <maximumf>, %114, %cst_49 [1] : vector<64x64xf32> to vector<64xf32>
    %116 = vector.shape_cast %115 : vector<64xf32> to vector<64x1xf32>
    %117 = vector.broadcast %116 : vector<64x1xf32> to vector<64x64xf32>
    %118 = arith.subf %114, %117 : vector<64x64xf32>
    %119 = math.exp %118 : vector<64x64xf32>
    %cst_50 = arith.constant dense<0.000000e+00> : vector<64xf32>
    %120 = vector.multi_reduction <add>, %119, %cst_50 [1] : vector<64x64xf32> to vector<64xf32>
    %121 = vector.shape_cast %120 : vector<64xf32> to vector<64x1xf32>
    %122 = vector.broadcast %121 : vector<64x1xf32> to vector<64x64xf32>
    %123 = arith.divf %119, %122 : vector<64x64xf32>
    %cst_51 = arith.constant dense<0.000000e+00> : vector<64x96xf32>
    %124 = tpu.matmul %123, %100, %cst_51 {dimension_numbers = #tpu.dot_dimension_numbers<[1], [0], [0], [1], [0, 0, 1, 1], [], []>} : vector<64x64xf32>, vector<64x96xf32>, vector<64x96xf32> -> vector<64x96xf32>
    %c64_52 = arith.constant 64 : index
    %c0_53 = arith.constant 0 : index
    %125 = vector.load %arg7[%c64_52, %c0_53] : memref<128x96xf32, #tpu.memory_space<vmem>>, vector<64x96xf32>
    tpu.vector_store %arg7[%c64_52, %c0_53], %124 {strides = array<i32>} : memref<128x96xf32, #tpu.memory_space<vmem>>, vector<64x96xf32>,
    return
  }
  func.func @transform_0(%arg0: i32) -> (i32, i32) {
    %c0_i32 = arith.constant 0 : i32
    %c0_i32_0 = arith.constant 0 : i32
    %c0_i32_1 = arith.constant 0 : i32
    return %c0_i32, %c0_i32_0 : i32, i32
  }
  func.func @transform_1(%arg0: i32) -> (i32, i32, i32) {
    %c0_i32 = arith.constant 0 : i32
    %c0_i32_0 = arith.constant 0 : i32
    %c0_i32_1 = arith.constant 0 : i32
    %c0_i32_2 = arith.constant 0 : i32
    return %c0_i32, %c0_i32_0, %c0_i32_1 : i32, i32, i32
  }
  func.func @transform_2(%arg0: i32) -> (i32, i32) {
    %c0_i32 = arith.constant 0 : i32
    %c0_i32_0 = arith.constant 0 : i32
    %c0_i32_1 = arith.constant 0 : i32
    return %c0_i32, %c0_i32_0 : i32, i32
  }
  func.func @transform_3(%arg0: i32) -> (i32, i32) {
    %c0_i32 = arith.constant 0 : i32
    %c0_i32_0 = arith.constant 0 : i32
    %c0_i32_1 = arith.constant 0 : i32
    return %c0_i32, %c0_i32_0 : i32, i32
  }
  func.func @transform_4(%arg0: i32) -> (i32, i32, i32) {
    %c0_i32 = arith.constant 0 : i32
    %c0_i32_0 = arith.constant 0 : i32
    %c0_i32_1 = arith.constant 0 : i32
    %c0_i32_2 = arith.constant 0 : i32
    return %c0_i32, %c0_i32_0, %c0_i32_1 : i32, i32, i32
  }
  func.func @transform_5(%arg0: i32) -> (i32, i32, i32) {
    %c0_i32 = arith.constant 0 : i32
    %c0_i32_0 = arith.constant 0 : i32
    %c0_i32_1 = arith.constant 0 : i32
    %c0_i32_2 = arith.constant 0 : i32
    return %c0_i32, %c0_i32_0, %c0_i32_1 : i32, i32, i32
  }
  func.func @transform_6(%arg0: i32) -> (i32, i32) {
    %c0_i32 = arith.constant 0 : i32
    %c0_i32_0 = arith.constant 0 : i32
    %c0_i32_1 = arith.constant 0 : i32
    return %c0_i32, %c0_i32_0 : i32, i32
  }
}

</mosaic_0001>

<llo_original>
// kernel: tpu_custom_call.1
$region0: #{tpu_custom_call.1}
  #allocation0 [shape = 'u32[]', space=smem, size = 0x4, offset = 0x4, fixed_abs, tag = 'smem constant byte address 0x4 - core index']
  #allocation1 [shape = 'u32[72,128]{1,0:T(1,128)}', space=vmem, size = 0x9000, scoped, tag = 'internal scratch']
  #allocation2 [shape = 'f32[128,96]{1,0:T(8,128)}', space=vmem, size = 0x10000, scoped, tag = 'scratch operand']
  %s0 = inlined_call_operand.vmem [shape: f32[128,4], index: 0, kind: input, shape index: {}]
  %s1 = inlined_call_operand.vmem [shape: f32[2,64,64], index: 1, kind: input, shape index: {}]
  %s2 = inlined_call_operand.vmem [shape: f32[4,96], index: 2, kind: input, shape index: {}]
  %s3 = inlined_call_operand.vmem [shape: f32[96,2], index: 3, kind: input, shape index: {}]
  %s4 = inlined_call_operand.vmem [shape: f32[1,96,96], index: 4, kind: input, shape index: {}]
  %s5 = inlined_call_operand.vmem [shape: f32[1,96,2], index: 5, kind: input, shape index: {}]
  %s6 = inlined_call_operand.vmem [shape: f32[128,96], index: 6, kind: output, shape index: {}]
  %s7 = sld [smem:[#allocation0]]
  $region34: #{tpu_custom_call.1} parent=0
    _
  %s9 = ssub.s32 1, %s7
  %s10 = scalar_select 0, %s9, %s7
  // Predicated region
  $region2: #{tpu_custom_call.1} parent=0 // pred_check
    _
  $region3: #{tpu_custom_call.1} parent=0 // pred_check_branch
    %12 = sbr.rel (0) target = $region5
  $region4: #{tpu_custom_call.1} parent=0 // pred_region
    _
  $region5: #{tpu_custom_call.1} parent=0 // pred_fallthru
    _
  // Predicated region
  $region6: #{tpu_custom_call.1} parent=0 // pred_check
    _
  $region7: #{tpu_custom_call.1} parent=0 // pred_check_branch
    %14 = sbr.rel (0) target = $region9
  $region8: #{tpu_custom_call.1} parent=0 // pred_region
    _
  $region9: #{tpu_custom_call.1} parent=0 // pred_fallthru
    _
  // Predicated region
  $region10: #{tpu_custom_call.1} parent=0 // pred_check
    _
  $region11: #{tpu_custom_call.1} parent=0 // pred_check_branch
    %16 = sbr.rel (0) target = $region13
  $region12: #{tpu_custom_call.1} parent=0 // pred_region
    _
  $region13: #{tpu_custom_call.1} parent=0 // pred_fallthru
    _
  // Predicated region
  $region14: #{tpu_custom_call.1} parent=0 // pred_check
    _
  $region15: #{tpu_custom_call.1} parent=0 // pred_check_branch
    %18 = sbr.rel (0) target = $region17
  $region16: #{tpu_custom_call.1} parent=0 // pred_region
    _
  $region17: #{tpu_custom_call.1} parent=0 // pred_fallthru
    _
  // Predicated region
  $region18: #{tpu_custom_call.1} parent=0 // pred_check
    _
  $region19: #{tpu_custom_call.1} parent=0 // pred_check_branch
    %20 = sbr.rel (0) target = $region21
  $region20: #{tpu_custom_call.1} parent=0 // pred_region
    _
  $region21: #{tpu_custom_call.1} parent=0 // pred_fallthru
    _
  // Predicated region
  $region22: #{tpu_custom_call.1} parent=0 // pred_check
    _
  $region23: #{tpu_custom_call.1} parent=0 // pred_check_branch
    %22 = sbr.rel (0) target = $region25
  $region24: #{tpu_custom_call.1} parent=0 // pred_region
    _
  $region25: #{tpu_custom_call.1} parent=0 // pred_fallthru
    _
  %v23 = vld [vmem:[%s1] sm:$0xff]
  %v24 = vld [vmem:[%s1 + $0x8] sm:$0xff]
  %v25 = vld [vmem:[%s1 + $0x10] sm:$0xff]
  %v26 = vld [vmem:[%s1 + $0x18] sm:$0xff]
  %v27 = vld [vmem:[%s1 + $0x20] sm:$0xff]
  %v28 = vld [vmem:[%s1 + $0x28] sm:$0xff]
  %v29 = vld [vmem:[%s1 + $0x30] sm:$0xff]
  %v30 = vld [vmem:[%s1 + $0x38] sm:$0xff]
  %v31 = vand.u32 2147483647, %v23
  %v32 = vand.u32 2147483647, %v24
  %v33 = vand.u32 2147483647, %v25
  %v34 = vand.u32 2147483647, %v26
  %v35 = vand.u32 2147483647, %v27
  %v36 = vand.u32 2147483647, %v28
  %v37 = vand.u32 2147483647, %v29
  %v38 = vand.u32 2147483647, %v30
  %vm39 = vcmp.gt.f32.partialorder %v31, 1e-06
  %vm40 = vcmp.gt.f32.partialorder %v32, 1e-06
  %vm41 = vcmp.gt.f32.partialorder %v33, 1e-06
  %vm42 = vcmp.gt.f32.partialorder %v34, 1e-06
  %vm43 = vcmp.gt.f32.partialorder %v35, 1e-06
  %vm44 = vcmp.gt.f32.partialorder %v36, 1e-06
  %vm45 = vcmp.gt.f32.partialorder %v37, 1e-06
  %vm46 = vcmp.gt.f32.partialorder %v38, 1e-06
  %s47 = scalar_lea.vmem %s1, 64
  %v48 = vld [vmem:[%s47] sm:$0xff]
  %v49 = vld [vmem:[%s47 + $0x8] sm:$0xff]
  %v50 = vld [vmem:[%s47 + $0x10] sm:$0xff]
  %v51 = vld [vmem:[%s47 + $0x18] sm:$0xff]
  %v52 = vld [vmem:[%s47 + $0x20] sm:$0xff]
  %v53 = vld [vmem:[%s47 + $0x28] sm:$0xff]
  %v54 = vld [vmem:[%s47 + $0x30] sm:$0xff]
  %v55 = vld [vmem:[%s47 + $0x38] sm:$0xff]
  %v56 = vand.u32 2147483647, %v48
  %v57 = vand.u32 2147483647, %v49
  %v58 = vand.u32 2147483647, %v50
  %v59 = vand.u32 2147483647, %v51
  %v60 = vand.u32 2147483647, %v52
  %v61 = vand.u32 2147483647, %v53
  %v62 = vand.u32 2147483647, %v54
  %v63 = vand.u32 2147483647, %v55
  %vm64 = vcmp.gt.f32.partialorder %v56, 1e-06
  %vm65 = vcmp.gt.f32.partialorder %v57, 1e-06
  %vm66 = vcmp.gt.f32.partialorder %v58, 1e-06
  %vm67 = vcmp.gt.f32.partialorder %v59, 1e-06
  %vm68 = vcmp.gt.f32.partialorder %v60, 1e-06
  %vm69 = vcmp.gt.f32.partialorder %v61, 1e-06
  %vm70 = vcmp.gt.f32.partialorder %v62, 1e-06
  %vm71 = vcmp.gt.f32.partialorder %v63, 1e-06
  %v72 = vld [vmem:[%s0] sm:$0xff]
  %v73 = vld [vmem:[%s0 + $0x8] sm:$0xff]
  %v74 = vld [vmem:[%s0 + $0x10] sm:$0xff]
  %v75 = vld [vmem:[%s0 + $0x18] sm:$0xff]
  %v76 = vld [vmem:[%s0 + $0x20] sm:$0xff]
  %v77 = vld [vmem:[%s0 + $0x28] sm:$0xff]
  %v78 = vld [vmem:[%s0 + $0x30] sm:$0xff]
  %v79 = vld [vmem:[%s0 + $0x38] sm:$0xff]
  %v80 = vld [vmem:[%s0 + $0x40] sm:$0xff]
  %v81 = vld [vmem:[%s0 + $0x48] sm:$0xff]
  %v82 = vld [vmem:[%s0 + $0x50] sm:$0xff]
  %v83 = vld [vmem:[%s0 + $0x58] sm:$0xff]
  %v84 = vld [vmem:[%s0 + $0x60] sm:$0xff]
  %v85 = vld [vmem:[%s0 + $0x68] sm:$0xff]
  %v86 = vld [vmem:[%s0 + $0x70] sm:$0xff]
  %v87 = vld [vmem:[%s0 + $0x78] sm:$0xff]
  %v88 = vld [vmem:[%s2] sm:$0xf]
  %v89 = vld [vmem:[%s3] sm:$0xff]
  %v90 = vld [vmem:[%s3 + $0x8] sm:$0xff]
  %v91 = vld [vmem:[%s3 + $0x10] sm:$0xff]
  %v92 = vld [vmem:[%s3 + $0x18] sm:$0xff]
  %v93 = vld [vmem:[%s3 + $0x20] sm:$0xff]
  %v94 = vld [vmem:[%s3 + $0x28] sm:$0xff]
  %v95 = vld [vmem:[%s3 + $0x30] sm:$0xff]
  %v96 = vld [vmem:[%s3 + $0x38] sm:$0xff]
  %v97 = vld [vmem:[%s3 + $0x40] sm:$0xff]
  %v98 = vld [vmem:[%s3 + $0x48] sm:$0xff]
  %v99 = vld [vmem:[%s3 + $0x50] sm:$0xff]
  %v100 = vld [vmem:[%s3 + $0x58] sm:$0xff]
  %vm101 = vcmask 31744
  %v103 = vsel %vm101, %v72, 0
  %v106 = vsel %vm101, %v73, 0
  %v109 = vsel %vm101, %v74, 0
  %v112 = vsel %vm101, %v75, 0
  %v115 = vsel %vm101, %v76, 0
  %v118 = vsel %vm101, %v77, 0
  %v121 = vsel %vm101, %v78, 0
  %v124 = vsel %vm101, %v79, 0
  %v127 = vsel %vm101, %v80, 0
  %v130 = vsel %vm101, %v81, 0
  %v133 = vsel %vm101, %v82, 0
  %v136 = vsel %vm101, %v83, 0
  %v139 = vsel %vm101, %v84, 0
  %v142 = vsel %vm101, %v85, 0
  %v145 = vsel %vm101, %v86, 0
  %v148 = vsel %vm101, %v87, 0
  %vm150 = vcmask 1043456
  %v152 = vsel %vm150, %v88, 0
  %154 = vmatpush.msra.mxu0 0.0
  %155 = vmatpush.msra.mxu0 0.0
  %156 = vmatpush.msra.mxu0 0.0
  %157 = vmatpush.msra.mxu0 0.0
  %158 = vmatpush.msra.mxu0 0.0
  %159 = vmatpush.msra.mxu0 0.0
  %160 = vmatpush.msra.mxu0 0.0
  %161 = vmatpush.msra.mxu0 0.0
  %162 = vmatpush.msra.mxu0 0.0
  %163 = vmatpush.msra.mxu0 0.0
  %164 = vmatpush.msra.mxu0 0.0
  %165 = vmatpush.msra.mxu0 0.0
  %166 = vmatpush.msra.mxu0 0.0
  %167 = vmatpush.msra.mxu0 0.0
  %168 = vmatpush.msra.mxu0 0.0
  %169 = vmatpush.msra.mxu0 %v152
  %170 = vmatmul.f32.gmra.mxu0 %v103
  %v171 = vpop.f32.mrf.mxu0
  %v172 = vadd.f32 0.0, %v171
  %173 = vmatmul.f32.gmra.mxu0 %v106
  %v174 = vpop.f32.mrf.mxu0
  %v175 = vadd.f32 0.0, %v174
  %176 = vmatmul.f32.gmra.mxu0 %v109
  %v177 = vpop.f32.mrf.mxu0
  %v178 = vadd.f32 0.0, %v177
  %179 = vmatmul.f32.gmra.mxu0 %v112
  %v180 = vpop.f32.mrf.mxu0
  %v181 = vadd.f32 0.0, %v180
  %182 = vmatmul.f32.gmra.mxu0 %v115
  %v183 = vpop.f32.mrf.mxu0
  %v184 = vadd.f32 0.0, %v183
  %185 = vmatmul.f32.gmra.mxu0 %v118
  %v186 = vpop.f32.mrf.mxu0
  %v187 = vadd.f32 0.0, %v186
  %188 = vmatmul.f32.gmra.mxu0 %v121
  %v189 = vpop.f32.mrf.mxu0
  %v190 = vadd.f32 0.0, %v189
  %191 = vmatmul.f32.gmra.mxu0 %v124
  %v192 = vpop.f32.mrf.mxu0
  %v193 = vadd.f32 0.0, %v192
  %194 = vmatmul.f32.gmra.mxu0 %v127
  %v195 = vpop.f32.mrf.mxu0
  %v196 = vadd.f32 0.0, %v195
  %197 = vmatmul.f32.gmra.mxu0 %v130
  %v198 = vpop.f32.mrf.mxu0
  %v199 = vadd.f32 0.0, %v198
  %200 = vmatmul.f32.gmra.mxu0 %v133
  %v201 = vpop.f32.mrf.mxu0
  %v202 = vadd.f32 0.0, %v201
  %203 = vmatmul.f32.gmra.mxu0 %v136
  %v204 = vpop.f32.mrf.mxu0
  %v205 = vadd.f32 0.0, %v204
  %206 = vmatmul.f32.gmra.mxu0 %v139
  %v207 = vpop.f32.mrf.mxu0
  %v208 = vadd.f32 0.0, %v207
  %209 = vmatmul.f32.gmra.mxu0 %v142
  %v210 = vpop.f32.mrf.mxu0
  %v211 = vadd.f32 0.0, %v210
  %212 = vmatmul.f32.gmra.mxu0 %v145
  %v213 = vpop.f32.mrf.mxu0
  %v214 = vadd.f32 0.0, %v213
  %215 = vmatmul.f32.gmra.mxu0 %v148
  %v216 = vpop.f32.mrf.mxu0
  %v217 = vadd.f32 0.0, %v216
  %218 = vdwg.mxu0
  %vm219 = vcmask 785408
  %v221 = vsel %vm219, %v172, 0
  %v224 = vsel %vm219, %v175, 0
  %v227 = vsel %vm219, %v178, 0
  %v230 = vsel %vm219, %v181, 0
  %v233 = vsel %vm219, %v184, 0
  %v236 = vsel %vm219, %v187, 0
  %v239 = vsel %vm219, %v190, 0
  %v242 = vsel %vm219, %v193, 0
  %v245 = vsel %vm219, %v196, 0
  %v248 = vsel %vm219, %v199, 0
  %v251 = vsel %vm219, %v202, 0
  %v254 = vsel %vm219, %v205, 0
  %v257 = vsel %vm219, %v208, 0
  %v260 = vsel %vm219, %v211, 0
  %v263 = vsel %vm219, %v214, 0
  %v266 = vsel %vm219, %v217, 0
  %268 = vmatpush.msra.mxu0 0.0
  %269 = vmatpush.msra.mxu0 0.0
  %270 = vmatpush.msra.mxu0 0.0
  %271 = vmatpush.msra.mxu0 0.0
  %272 = vmatpush.msra.mxu0 %v100
  %273 = vmatpush.msra.mxu0 %v99
  %274 = vmatpush.msra.mxu0 %v98
  %275 = vmatpush.msra.mxu0 %v97
  %276 = vmatpush.msra.mxu0 %v96
  %277 = vmatpush.msra.mxu0 %v95
  %278 = vmatpush.msra.mxu0 %v94
  %279 = vmatpush.msra.mxu0 %v93
  %280 = vmatpush.msra.mxu0 %v92
  %281 = vmatpush.msra.mxu0 %v91
  %282 = vmatpush.msra.mxu0 %v90
  %283 = vmatpush.msra.mxu0 %v89
  %284 = vmatmul.f32.gmra.mxu0 %v221
  %v285 = vpop.f32.mrf.mxu0
  %v286 = vadd.f32 0.0, %v285
  %287 = vmatmul.f32.gmra.mxu0 %v224
  %v288 = vpop.f32.mrf.mxu0
  %v289 = vadd.f32 0.0, %v288
  %290 = vmatmul.f32.gmra.mxu0 %v227
  %v291 = vpop.f32.mrf.mxu0
  %v292 = vadd.f32 0.0, %v291
  %293 = vmatmul.f32.gmra.mxu0 %v230
  %v294 = vpop.f32.mrf.mxu0
  %v295 = vadd.f32 0.0, %v294
  %296 = vmatmul.f32.gmra.mxu0 %v233
  %v297 = vpop.f32.mrf.mxu0
  %v298 = vadd.f32 0.0, %v297
  %299 = vmatmul.f32.gmra.mxu0 %v236
  %v300 = vpop.f32.mrf.mxu0
  %v301 = vadd.f32 0.0, %v300
  %302 = vmatmul.f32.gmra.mxu0 %v239
  %v303 = vpop.f32.mrf.mxu0
  %v304 = vadd.f32 0.0, %v303
  %305 = vmatmul.f32.gmra.mxu0 %v242
  %v306 = vpop.f32.mrf.mxu0
  %v307 = vadd.f32 0.0, %v306
  %308 = vmatmul.f32.gmra.mxu0 %v245
  %v309 = vpop.f32.mrf.mxu0
  %v310 = vadd.f32 0.0, %v309
  %311 = vmatmul.f32.gmra.mxu0 %v248
  %v312 = vpop.f32.mrf.mxu0
  %v313 = vadd.f32 0.0, %v312
  %314 = vmatmul.f32.gmra.mxu0 %v251
  %v315 = vpop.f32.mrf.mxu0
  %v316 = vadd.f32 0.0, %v315
  %317 = vmatmul.f32.gmra.mxu0 %v254
  %v318 = vpop.f32.mrf.mxu0
  %v319 = vadd.f32 0.0, %v318
  %320 = vmatmul.f32.gmra.mxu0 %v257
  %v321 = vpop.f32.mrf.mxu0
  %v322 = vadd.f32 0.0, %v321
  %323 = vmatmul.f32.gmra.mxu0 %v260
  %v324 = vpop.f32.mrf.mxu0
  %v325 = vadd.f32 0.0, %v324
  %326 = vmatmul.f32.gmra.mxu0 %v263
  %v327 = vpop.f32.mrf.mxu0
  %v328 = vadd.f32 0.0, %v327
  %329 = vmatmul.f32.gmra.mxu0 %v266
  %v330 = vpop.f32.mrf.mxu0
  %v331 = vadd.f32 0.0, %v330
  %332 = vdwg.mxu0
  %341 = vrot.lane.b32.xlu0 %v286, 127
  %v342 = vpop.permute.xlu0 %341
  %343 = vrot.lane.b32.xlu0 %v289, 127
  %v344 = vpop.permute.xlu0 %343
  %345 = vrot.lane.b32.xlu0 %v292, 127
  %v346 = vpop.permute.xlu0 %345
  %347 = vrot.lane.b32.xlu0 %v295, 127
  %v348 = vpop.permute.xlu0 %347
  %349 = vrot.lane.b32.xlu0 %v298, 127
  %v350 = vpop.permute.xlu0 %349
  %351 = vrot.lane.b32.xlu0 %v301, 127
  %v352 = vpop.permute.xlu0 %351
  %353 = vrot.lane.b32.xlu0 %v304, 127
  %v354 = vpop.permute.xlu0 %353
  %355 = vrot.lane.b32.xlu0 %v307, 127
  %v356 = vpop.permute.xlu0 %355
  %365 = vxpose.xlu0.b32.start [1/16] %v342, 128
  %366 = vxpose.xlu0.b32.cont [2/16] %v344, 128
  %367 = vxpose.xlu0.b32.cont [3/16] %v346, 128
  %368 = vxpose.xlu0.b32.cont [4/16] %v348, 128
  %369 = vxpose.xlu0.b32.cont [5/16] %v350, 128
  %370 = vxpose.xlu0.b32.cont [6/16] %v352, 128
  %371 = vxpose.xlu0.b32.cont [7/16] %v354, 128
  %372 = vxpose.xlu0.b32.cont [8/16] %v356, 128
  %373 = vxpose.xlu0.b32.cont [9/16] 0.0, 128
  %374 = vxpose.xlu0.b32.cont [10/16] 0.0, 128
  %375 = vxpose.xlu0.b32.cont [11/16] 0.0, 128
  %376 = vxpose.xlu0.b32.cont [12/16] 0.0, 128
  %377 = vxpose.xlu0.b32.cont [13/16] 0.0, 128
  %378 = vxpose.xlu0.b32.cont [14/16] 0.0, 128
  %379 = vxpose.xlu0.b32.cont [15/16] 0.0, 128
  %380 = vxpose.xlu0.b32.end [16/16] 0.0, 128
  %v381 = vpop.trf.xlu0
  %v382 = vpop.trf.xlu0
  %v383 = vpop.trf.xlu0
  %v384 = vpop.trf.xlu0
  %v385 = vpop.trf.xlu0
  %v386 = vpop.trf.xlu0
  %v387 = vpop.trf.xlu0
  %v388 = vpop.trf.xlu0
  %v389 = vpop.trf.xlu0
  %v390 = vpop.trf.xlu0
  %v391 = vpop.trf.xlu0
  %v392 = vpop.trf.xlu0
  %v393 = vpop.trf.xlu0
  %v394 = vpop.trf.xlu0
  %v395 = vpop.trf.xlu0
  %v396 = vpop.trf.xlu0
  %397 = vset.pattern.permute.xlu0 0
  %398 = vperm.xlu0 %397, %v286
  %v399 = vpop.permute.xlu0 %398
  %401 = vset.pattern.permute.xlu0 0
  %402 = vperm.xlu0 %401, %v289
  %v403 = vpop.permute.xlu0 %402
  %405 = vset.pattern.permute.xlu0 0
  %406 = vperm.xlu0 %405, %v292
  %v407 = vpop.permute.xlu0 %406
  %409 = vset.pattern.permute.xlu0 0
  %410 = vperm.xlu0 %409, %v295
  %v411 = vpop.permute.xlu0 %410
  %413 = vset.pattern.permute.xlu0 0
  %414 = vperm.xlu0 %413, %v298
  %v415 = vpop.permute.xlu0 %414
  %417 = vset.pattern.permute.xlu0 0
  %418 = vperm.xlu0 %417, %v301
  %v419 = vpop.permute.xlu0 %418
  %421 = vset.pattern.permute.xlu0 0
  %422 = vperm.xlu0 %421, %v304
  %v423 = vpop.permute.xlu0 %422
  %425 = vset.pattern.permute.xlu0 0
  %426 = vperm.xlu0 %425, %v307
  %v427 = vpop.permute.xlu0 %426
  %v429 = vperm.slane %v381, 0
  %v430 = vadd.f32 %v399, %v429
  %v431 = vadd.f32 %v403, %v429
  %v432 = vadd.f32 %v407, %v429
  %v433 = vadd.f32 %v411, %v429
  %v434 = vadd.f32 %v415, %v429
  %v435 = vadd.f32 %v419, %v429
  %v436 = vadd.f32 %v423, %v429
  %v437 = vadd.f32 %v427, %v429
  %vm438 = vcmp.ge.f32.partialorder %v430, 0.0
  %vm439 = vcmp.ge.f32.partialorder %v431, 0.0
  %vm440 = vcmp.ge.f32.partialorder %v432, 0.0
  %vm441 = vcmp.ge.f32.partialorder %v433, 0.0
  %vm442 = vcmp.ge.f32.partialorder %v434, 0.0
  %vm443 = vcmp.ge.f32.partialorder %v435, 0.0
  %vm444 = vcmp.ge.f32.partialorder %v436, 0.0
  %vm445 = vcmp.ge.f32.partialorder %v437, 0.0
  %v446 = vmul.f32 %v430, 0.01
  %v447 = vmul.f32 %v431, 0.01
  %v448 = vmul.f32 %v432, 0.01
  %v449 = vmul.f32 %v433, 0.01
  %v450 = vmul.f32 %v434, 0.01
  %v451 = vmul.f32 %v435, 0.01
  %v452 = vmul.f32 %v436, 0.01
  %v453 = vmul.f32 %v437, 0.01
  %v454 = vsel %vm438, %v430, %v446
  %v455 = vsel %vm439, %v431, %v447
  %v456 = vsel %vm440, %v432, %v448
  %v457 = vsel %vm441, %v433, %v449
  %v458 = vsel %vm442, %v434, %v450
  %v459 = vsel %vm443, %v435, %v451
  %v460 = vsel %vm444, %v436, %v452
  %v461 = vsel %vm445, %v437, %v453
  %v462 = vsel %vm39, %v454, -9e+15
  %v463 = vsel %vm40, %v455, -9e+15
  %v464 = vsel %vm41, %v456, -9e+15
  %v465 = vsel %vm42, %v457, -9e+15
  %v466 = vsel %vm43, %v458, -9e+15
  %v467 = vsel %vm44, %v459, -9e+15
  %v468 = vsel %vm45, %v460, -9e+15
  %v469 = vsel %vm46, %v461, -9e+15
  %vm470 = vcmask 523264
  %v471 = vsel %vm470, %v462, -inf
  %472 = vmax.xlane.f32.xlu0 %v471
  %v473 = vpop.xlane.xlu0 %472
  %v474 = vsel %vm470, %v463, -inf
  %475 = vmax.xlane.f32.xlu0 %v474
  %v476 = vpop.xlane.xlu0 %475
  %v477 = vsel %vm470, %v464, -inf
  %478 = vmax.xlane.f32.xlu0 %v477
  %v479 = vpop.xlane.xlu0 %478
  %v480 = vsel %vm470, %v465, -inf
  %481 = vmax.xlane.f32.xlu0 %v480
  %v482 = vpop.xlane.xlu0 %481
  %v483 = vsel %vm470, %v466, -inf
  %484 = vmax.xlane.f32.xlu0 %v483
  %v485 = vpop.xlane.xlu0 %484
  %v486 = vsel %vm470, %v467, -inf
  %487 = vmax.xlane.f32.xlu0 %v486
  %v488 = vpop.xlane.xlu0 %487
  %v489 = vsel %vm470, %v468, -inf
  %490 = vmax.xlane.f32.xlu0 %v489
  %v491 = vpop.xlane.xlu0 %490
  %v492 = vsel %vm470, %v469, -inf
  %493 = vmax.xlane.f32.xlu0 %v492
  %v494 = vpop.xlane.xlu0 %493
  %v495 = vsub.f32 %v462, %v473
  %v496 = vsub.f32 %v463, %v476
  %v497 = vsub.f32 %v464, %v479
  %v498 = vsub.f32 %v465, %v482
  %v499 = vsub.f32 %v466, %v485
  %v500 = vsub.f32 %v467, %v488
  %v501 = vsub.f32 %v468, %v491
  %v502 = vsub.f32 %v469, %v494
  %v503 = vmul.f32 %v495, 1.442695
  %v504 = vpow.pop %v503
  %v505 = vmul.f32 %v496, 1.442695
  %v506 = vpow.pop %v505
  %v507 = vmul.f32 %v497, 1.442695
  %v508 = vpow.pop %v507
  %v509 = vmul.f32 %v498, 1.442695
  %v510 = vpow.pop %v509
  %v511 = vmul.f32 %v499, 1.442695
  %v512 = vpow.pop %v511
  %v513 = vmul.f32 %v500, 1.442695
  %v514 = vpow.pop %v513
  %v515 = vmul.f32 %v501, 1.442695
  %v516 = vpow.pop %v515
  %v517 = vmul.f32 %v502, 1.442695
  %v518 = vpow.pop %v517
  %v519 = vsel %vm470, %v504, 0.0
  %520 = vadd.xlane.f32.xlu0 %v519
  %v521 = vpop.xlane.xlu0 %520
  %v522 = vsel %vm470, %v506, 0.0
  %523 = vadd.xlane.f32.xlu0 %v522
  %v524 = vpop.xlane.xlu0 %523
  %v525 = vsel %vm470, %v508, 0.0
  %526 = vadd.xlane.f32.xlu0 %v525
  %v527 = vpop.xlane.xlu0 %526
  %v528 = vsel %vm470, %v510, 0.0
  %529 = vadd.xlane.f32.xlu0 %v528
  %v530 = vpop.xlane.xlu0 %529
  %v531 = vsel %vm470, %v512, 0.0
  %532 = vadd.xlane.f32.xlu0 %v531
  %v533 = vpop.xlane.xlu0 %532
  %v534 = vsel %vm470, %v514, 0.0
  %535 = vadd.xlane.f32.xlu0 %v534
  %v536 = vpop.xlane.xlu0 %535
  %v537 = vsel %vm470, %v516, 0.0
  %538 = vadd.xlane.f32.xlu0 %v537
  %v539 = vpop.xlane.xlu0 %538
  %v540 = vsel %vm470, %v518, 0.0
  %541 = vadd.xlane.f32.xlu0 %v540
  %v542 = vpop.xlane.xlu0 %541
  %v543 = vrcp.pop %v521
  %v544 = vmul.f32 %v521, %v543
  %v545 = vsub.f32 1.0, %v544
  %v546 = vmul.f32 %v543, %v545
  %v547 = vadd.f32 %v543, %v546
  %vm548 = vweird.f32 %v521
  %vm549 = vweird.f32 %v543
  %vm550 = vmor %vm548, %vm549
  %v551 = vsel %vm550, %v543, %v547
  %v552 = vand.u32 2147483647, %v521
  %vm553 = vcmp.eq.f32.partialorder %v552, 8.507059e+37
  %v554 = vand.u32 %v521, 2147483648
  %v555 = vor.u32 1.1754944e-38, %v554
  %v556 = vsel %vm553, %v555, %v551
  %v557 = vmul.f32 %v504, %v556
  %v558 = vrcp.pop %v524
  %v559 = vmul.f32 %v524, %v558
  %v560 = vsub.f32 1.0, %v559
  %v561 = vmul.f32 %v558, %v560
  %v562 = vadd.f32 %v558, %v561
  %vm563 = vweird.f32 %v524
  %vm564 = vweird.f32 %v558
  %vm565 = vmor %vm563, %vm564
  %v566 = vsel %vm565, %v558, %v562
  %v567 = vand.u32 2147483647, %v524
  %vm568 = vcmp.eq.f32.partialorder %v567, 8.507059e+37
  %v569 = vand.u32 %v524, 2147483648
  %v570 = vor.u32 1.1754944e-38, %v569
  %v571 = vsel %vm568, %v570, %v566
  %v572 = vmul.f32 %v506, %v571
  %v573 = vrcp.pop %v527
  %v574 = vmul.f32 %v527, %v573
  %v575 = vsub.f32 1.0, %v574
  %v576 = vmul.f32 %v573, %v575
  %v577 = vadd.f32 %v573, %v576
  %vm578 = vweird.f32 %v527
  %vm579 = vweird.f32 %v573
  %vm580 = vmor %vm578, %vm579
  %v581 = vsel %vm580, %v573, %v577
  %v582 = vand.u32 2147483647, %v527
  %vm583 = vcmp.eq.f32.partialorder %v582, 8.507059e+37
  %v584 = vand.u32 %v527, 2147483648
  %v585 = vor.u32 1.1754944e-38, %v584
  %v586 = vsel %vm583, %v585, %v581
  %v587 = vmul.f32 %v508, %v586
  %v588 = vrcp.pop %v530
  %v589 = vmul.f32 %v530, %v588
  %v590 = vsub.f32 1.0, %v589
  %v591 = vmul.f32 %v588, %v590
  %v592 = vadd.f32 %v588, %v591
  %vm593 = vweird.f32 %v530
  %vm594 = vweird.f32 %v588
  %vm595 = vmor %vm593, %vm594
  %v596 = vsel %vm595, %v588, %v592
  %v597 = vand.u32 2147483647, %v530
  %vm598 = vcmp.eq.f32.partialorder %v597, 8.507059e+37
  %v599 = vand.u32 %v530, 2147483648
  %v600 = vor.u32 1.1754944e-38, %v599
  %v601 = vsel %vm598, %v600, %v596
  %v602 = vmul.f32 %v510, %v601
  %v603 = vrcp.pop %v533
  %v604 = vmul.f32 %v533, %v603
  %v605 = vsub.f32 1.0, %v604
  %v606 = vmul.f32 %v603, %v605
  %v607 = vadd.f32 %v603, %v606
  %vm608 = vweird.f32 %v533
  %vm609 = vweird.f32 %v603
  %vm610 = vmor %vm608, %vm609
  %v611 = vsel %vm610, %v603, %v607
  %v612 = vand.u32 2147483647, %v533
  %vm613 = vcmp.eq.f32.partialorder %v612, 8.507059e+37
  %v614 = vand.u32 %v533, 2147483648
  %v615 = vor.u32 1.1754944e-38, %v614
  %v616 = vsel %vm613, %v615, %v611
  %v617 = vmul.f32 %v512, %v616
  %v618 = vrcp.pop %v536
  %v619 = vmul.f32 %v536, %v618
  %v620 = vsub.f32 1.0, %v619
  %v621 = vmul.f32 %v618, %v620
  %v622 = vadd.f32 %v618, %v621
  %vm623 = vweird.f32 %v536
  %vm624 = vweird.f32 %v618
  %vm625 = vmor %vm623, %vm624
  %v626 = vsel %vm625, %v618, %v622
  %v627 = vand.u32 2147483647, %v536
  %vm628 = vcmp.eq.f32.partialorder %v627, 8.507059e+37
  %v629 = vand.u32 %v536, 2147483648
  %v630 = vor.u32 1.1754944e-38, %v629
  %v631 = vsel %vm628, %v630, %v626
  %v632 = vmul.f32 %v514, %v631
  %v633 = vrcp.pop %v539
  %v634 = vmul.f32 %v539, %v633
  %v635 = vsub.f32 1.0, %v634
  %v636 = vmul.f32 %v633, %v635
  %v637 = vadd.f32 %v633, %v636
  %vm638 = vweird.f32 %v539
  %vm639 = vweird.f32 %v633
  %vm640 = vmor %vm638, %vm639
  %v641 = vsel %vm640, %v633, %v637
  %v642 = vand.u32 2147483647, %v539
  %vm643 = vcmp.eq.f32.partialorder %v642, 8.507059e+37
  %v644 = vand.u32 %v539, 2147483648
  %v645 = vor.u32 1.1754944e-38, %v644
  %v646 = vsel %vm643, %v645, %v641
  %v647 = vmul.f32 %v516, %v646
  %v648 = vrcp.pop %v542
  %v649 = vmul.f32 %v542, %v648
  %v650 = vsub.f32 1.0, %v649
  %v651 = vmul.f32 %v648, %v650
  %v652 = vadd.f32 %v648, %v651
  %vm653 = vweird.f32 %v542
  %vm654 = vweird.f32 %v648
  %vm655 = vmor %vm653, %vm654
  %v656 = vsel %vm655, %v648, %v652
  %v657 = vand.u32 2147483647, %v542
  %vm658 = vcmp.eq.f32.partialorder %v657, 8.507059e+37
  %v659 = vand.u32 %v542, 2147483648
  %v660 = vor.u32 1.1754944e-38, %v659
  %v661 = vsel %vm658, %v660, %v656
  %v662 = vmul.f32 %v518, %v661
  %v664 = vsel %vm470, %v557, 0
  %v667 = vsel %vm470, %v572, 0
  %v670 = vsel %vm470, %v587, 0
  %v673 = vsel %vm470, %v602, 0
  %v676 = vsel %vm470, %v617, 0
  %v679 = vsel %vm470, %v632, 0
  %v682 = vsel %vm470, %v647, 0
  %v685 = vsel %vm470, %v662, 0
  %687 = vmatpush.msra.mxu0 0.0
  %688 = vmatpush.msra.mxu0 0.0
  %689 = vmatpush.msra.mxu0 0.0
  %690 = vmatpush.msra.mxu0 0.0
  %691 = vmatpush.msra.mxu0 0.0
  %692 = vmatpush.msra.mxu0 0.0
  %693 = vmatpush.msra.mxu0 0.0
  %694 = vmatpush.msra.mxu0 0.0
  %695 = vmatpush.msra.mxu0 %v193
  %696 = vmatpush.msra.mxu0 %v190
  %697 = vmatpush.msra.mxu0 %v187
  %698 = vmatpush.msra.mxu0 %v184
  %699 = vmatpush.msra.mxu0 %v181
  %700 = vmatpush.msra.mxu0 %v178
  %701 = vmatpush.msra.mxu0 %v175
  %702 = vmatpush.msra.mxu0 %v172
  %703 = vmatmul.f32.gmra.mxu0 %v664
  %v704 = vpop.f32.mrf.mxu0
  %v705 = vadd.f32 0.0, %v704
  %706 = vmatmul.f32.gmra.mxu0 %v667
  %v707 = vpop.f32.mrf.mxu0
  %v708 = vadd.f32 0.0, %v707
  %709 = vmatmul.f32.gmra.mxu0 %v670
  %v710 = vpop.f32.mrf.mxu0
  %v711 = vadd.f32 0.0, %v710
  %712 = vmatmul.f32.gmra.mxu0 %v673
  %v713 = vpop.f32.mrf.mxu0
  %v714 = vadd.f32 0.0, %v713
  %715 = vmatmul.f32.gmra.mxu0 %v676
  %v716 = vpop.f32.mrf.mxu0
  %v717 = vadd.f32 0.0, %v716
  %718 = vmatmul.f32.gmra.mxu0 %v679
  %v719 = vpop.f32.mrf.mxu0
  %v720 = vadd.f32 0.0, %v719
  %721 = vmatmul.f32.gmra.mxu0 %v682
  %v722 = vpop.f32.mrf.mxu0
  %v723 = vadd.f32 0.0, %v722
  %724 = vmatmul.f32.gmra.mxu0 %v685
  %v725 = vpop.f32.mrf.mxu0
  %v726 = vadd.f32 0.0, %v725
  %727 = vdwg.mxu0
  %728 = vst.msk [vmem:[#allocation2] sm:$0xff] %vm219, %v705
  %729 = vst.msk [vmem:[#allocation2 + $0x8] sm:$0xff] %vm219, %v708
  %730 = vst.msk [vmem:[#allocation2 + $0x10] sm:$0xff] %vm219, %v711
  %731 = vst.msk [vmem:[#allocation2 + $0x18] sm:$0xff] %vm219, %v714
  %732 = vst.msk [vmem:[#allocation2 + $0x20] sm:$0xff] %vm219, %v717
  %733 = vst.msk [vmem:[#allocation2 + $0x28] sm:$0xff] %vm219, %v720
  %734 = vst.msk [vmem:[#allocation2 + $0x30] sm:$0xff] %vm219, %v723
  %735 = vst.msk [vmem:[#allocation2 + $0x38] sm:$0xff] %vm219, %v726
  %744 = vrot.lane.b32.xlu0 %v310, 127
  %v745 = vpop.permute.xlu0 %744
  %746 = vrot.lane.b32.xlu0 %v313, 127
  %v747 = vpop.permute.xlu0 %746
  %748 = vrot.lane.b32.xlu0 %v316, 127
  %v749 = vpop.permute.xlu0 %748
  %750 = vrot.lane.b32.xlu0 %v319, 127
  %v751 = vpop.permute.xlu0 %750
  %752 = vrot.lane.b32.xlu0 %v322, 127
  %v753 = vpop.permute.xlu0 %752
  %754 = vrot.lane.b32.xlu0 %v325, 127
  %v755 = vpop.permute.xlu0 %754
  %756 = vrot.lane.b32.xlu0 %v328, 127
  %v757 = vpop.permute.xlu0 %756
  %758 = vrot.lane.b32.xlu0 %v331, 127
  %v759 = vpop.permute.xlu0 %758
  %768 = vxpose.xlu0.b32.start [1/16] %v745, 128
  %769 = vxpose.xlu0.b32.cont [2/16] %v747, 128
  %770 = vxpose.xlu0.b32.cont [3/16] %v749, 128
  %771 = vxpose.xlu0.b32.cont [4/16] %v751, 128
  %772 = vxpose.xlu0.b32.cont [5/16] %v753, 128
  %773 = vxpose.xlu0.b32.cont [6/16] %v755, 128
  %774 = vxpose.xlu0.b32.cont [7/16] %v757, 128
  %775 = vxpose.xlu0.b32.cont [8/16] %v759, 128
  %776 = vxpose.xlu0.b32.cont [9/16] 0.0, 128
  %777 = vxpose.xlu0.b32.cont [10/16] 0.0, 128
  %778 = vxpose.xlu0.b32.cont [11/16] 0.0, 128
  %779 = vxpose.xlu0.b32.cont [12/16] 0.0, 128
  %780 = vxpose.xlu0.b32.cont [13/16] 0.0, 128
  %781 = vxpose.xlu0.b32.cont [14/16] 0.0, 128
  %782 = vxpose.xlu0.b32.cont [15/16] 0.0, 128
  %783 = vxpose.xlu0.b32.end [16/16] 0.0, 128
  %v784 = vpop.trf.xlu0
  %v785 = vpop.trf.xlu0
  %v786 = vpop.trf.xlu0
  %v787 = vpop.trf.xlu0
  %v788 = vpop.trf.xlu0
  %v789 = vpop.trf.xlu0
  %v790 = vpop.trf.xlu0
  %v791 = vpop.trf.xlu0
  %v792 = vpop.trf.xlu0
  %v793 = vpop.trf.xlu0
  %v794 = vpop.trf.xlu0
  %v795 = vpop.trf.xlu0
  %v796 = vpop.trf.xlu0
  %v797 = vpop.trf.xlu0
  %v798 = vpop.trf.xlu0
  %v799 = vpop.trf.xlu0
  %800 = vset.pattern.permute.xlu0 0
  %801 = vperm.xlu0 %800, %v310
  %v802 = vpop.permute.xlu0 %801
  %804 = vset.pattern.permute.xlu0 0
  %805 = vperm.xlu0 %804, %v313
  %v806 = vpop.permute.xlu0 %805
  %808 = vset.pattern.permute.xlu0 0
  %809 = vperm.xlu0 %808, %v316
  %v810 = vpop.permute.xlu0 %809
  %812 = vset.pattern.permute.xlu0 0
  %813 = vperm.xlu0 %812, %v319
  %v814 = vpop.permute.xlu0 %813
  %816 = vset.pattern.permute.xlu0 0
  %817 = vperm.xlu0 %816, %v322
  %v818 = vpop.permute.xlu0 %817
  %820 = vset.pattern.permute.xlu0 0
  %821 = vperm.xlu0 %820, %v325
  %v822 = vpop.permute.xlu0 %821
  %824 = vset.pattern.permute.xlu0 0
  %825 = vperm.xlu0 %824, %v328
  %v826 = vpop.permute.xlu0 %825
  %828 = vset.pattern.permute.xlu0 0
  %829 = vperm.xlu0 %828, %v331
  %v830 = vpop.permute.xlu0 %829
  %v832 = vperm.slane %v784, 0
  %v833 = vadd.f32 %v802, %v832
  %v834 = vadd.f32 %v806, %v832
  %v835 = vadd.f32 %v810, %v832
  %v836 = vadd.f32 %v814, %v832
  %v837 = vadd.f32 %v818, %v832
  %v838 = vadd.f32 %v822, %v832
  %v839 = vadd.f32 %v826, %v832
  %v840 = vadd.f32 %v830, %v832
  %vm841 = vcmp.ge.f32.partialorder %v833, 0.0
  %vm842 = vcmp.ge.f32.partialorder %v834, 0.0
  %vm843 = vcmp.ge.f32.partialorder %v835, 0.0
  %vm844 = vcmp.ge.f32.partialorder %v836, 0.0
  %vm845 = vcmp.ge.f32.partialorder %v837, 0.0
  %vm846 = vcmp.ge.f32.partialorder %v838, 0.0
  %vm847 = vcmp.ge.f32.partialorder %v839, 0.0
  %vm848 = vcmp.ge.f32.partialorder %v840, 0.0
  %v849 = vmul.f32 %v833, 0.01
  %v850 = vmul.f32 %v834, 0.01
  %v851 = vmul.f32 %v835, 0.01
  %v852 = vmul.f32 %v836, 0.01
  %v853 = vmul.f32 %v837, 0.01
  %v854 = vmul.f32 %v838, 0.01
  %v855 = vmul.f32 %v839, 0.01
  %v856 = vmul.f32 %v840, 0.01
  %v857 = vsel %vm841, %v833, %v849
  %v858 = vsel %vm842, %v834, %v850
  %v859 = vsel %vm843, %v835, %v851
  %v860 = vsel %vm844, %v836, %v852
  %v861 = vsel %vm845, %v837, %v853
  %v862 = vsel %vm846, %v838, %v854
  %v863 = vsel %vm847, %v839, %v855
  %v864 = vsel %vm848, %v840, %v856
  %v865 = vsel %vm64, %v857, -9e+15
  %v866 = vsel %vm65, %v858, -9e+15
  %v867 = vsel %vm66, %v859, -9e+15
  %v868 = vsel %vm67, %v860, -9e+15
  %v869 = vsel %vm68, %v861, -9e+15
  %v870 = vsel %vm69, %v862, -9e+15
  %v871 = vsel %vm70, %v863, -9e+15
  %v872 = vsel %vm71, %v864, -9e+15
  %v873 = vsel %vm470, %v865, -inf
  %874 = vmax.xlane.f32.xlu0 %v873
  %v875 = vpop.xlane.xlu0 %874
  %v876 = vsel %vm470, %v866, -inf
  %877 = vmax.xlane.f32.xlu0 %v876
  %v878 = vpop.xlane.xlu0 %877
  %v879 = vsel %vm470, %v867, -inf
  %880 = vmax.xlane.f32.xlu0 %v879
  %v881 = vpop.xlane.xlu0 %880
  %v882 = vsel %vm470, %v868, -inf
  %883 = vmax.xlane.f32.xlu0 %v882
  %v884 = vpop.xlane.xlu0 %883
  %v885 = vsel %vm470, %v869, -inf
  %886 = vmax.xlane.f32.xlu0 %v885
  %v887 = vpop.xlane.xlu0 %886
  %v888 = vsel %vm470, %v870, -inf
  %889 = vmax.xlane.f32.xlu0 %v888
  %v890 = vpop.xlane.xlu0 %889
  %v891 = vsel %vm470, %v871, -inf
  %892 = vmax.xlane.f32.xlu0 %v891
  %v893 = vpop.xlane.xlu0 %892
  %v894 = vsel %vm470, %v872, -inf
  %895 = vmax.xlane.f32.xlu0 %v894
  %v896 = vpop.xlane.xlu0 %895
  %v897 = vsub.f32 %v865, %v875
  %v898 = vsub.f32 %v866, %v878
  %v899 = vsub.f32 %v867, %v881
  %v900 = vsub.f32 %v868, %v884
  %v901 = vsub.f32 %v869, %v887
  %v902 = vsub.f32 %v870, %v890
  %v903 = vsub.f32 %v871, %v893
  %v904 = vsub.f32 %v872, %v896
  %v905 = vmul.f32 %v897, 1.442695
  %v906 = vpow.pop %v905
  %v907 = vmul.f32 %v898, 1.442695
  %v908 = vpow.pop %v907
  %v909 = vmul.f32 %v899, 1.442695
  %v910 = vpow.pop %v909
  %v911 = vmul.f32 %v900, 1.442695
  %v912 = vpow.pop %v911
  %v913 = vmul.f32 %v901, 1.442695
  %v914 = vpow.pop %v913
  %v915 = vmul.f32 %v902, 1.442695
  %v916 = vpow.pop %v915
  %v917 = vmul.f32 %v903, 1.442695
  %v918 = vpow.pop %v917
  %v919 = vmul.f32 %v904, 1.442695
  %v920 = vpow.pop %v919
  %v921 = vsel %vm470, %v906, 0.0
  %922 = vadd.xlane.f32.xlu0 %v921
  %v923 = vpop.xlane.xlu0 %922
  %v924 = vsel %vm470, %v908, 0.0
  %925 = vadd.xlane.f32.xlu0 %v924
  %v926 = vpop.xlane.xlu0 %925
  %v927 = vsel %vm470, %v910, 0.0
  %928 = vadd.xlane.f32.xlu0 %v927
  %v929 = vpop.xlane.xlu0 %928
  %v930 = vsel %vm470, %v912, 0.0
  %931 = vadd.xlane.f32.xlu0 %v930
  %v932 = vpop.xlane.xlu0 %931
  %v933 = vsel %vm470, %v914, 0.0
  %934 = vadd.xlane.f32.xlu0 %v933
  %v935 = vpop.xlane.xlu0 %934
  %v936 = vsel %vm470, %v916, 0.0
  %937 = vadd.xlane.f32.xlu0 %v936
  %v938 = vpop.xlane.xlu0 %937
  %v939 = vsel %vm470, %v918, 0.0
  %940 = vadd.xlane.f32.xlu0 %v939
  %v941 = vpop.xlane.xlu0 %940
  %v942 = vsel %vm470, %v920, 0.0
  %943 = vadd.xlane.f32.xlu0 %v942
  %v944 = vpop.xlane.xlu0 %943
  %v945 = vrcp.pop %v923
  %v946 = vmul.f32 %v923, %v945
  %v947 = vsub.f32 1.0, %v946
  %v948 = vmul.f32 %v945, %v947
  %v949 = vadd.f32 %v945, %v948
  %vm950 = vweird.f32 %v923
  %vm951 = vweird.f32 %v945
  %vm952 = vmor %vm950, %vm951
  %v953 = vsel %vm952, %v945, %v949
  %v954 = vand.u32 2147483647, %v923
  %vm955 = vcmp.eq.f32.partialorder %v954, 8.507059e+37
  %v956 = vand.u32 %v923, 2147483648
  %v957 = vor.u32 1.1754944e-38, %v956
  %v958 = vsel %vm955, %v957, %v953
  %v959 = vmul.f32 %v906, %v958
  %v960 = vrcp.pop %v926
  %v961 = vmul.f32 %v926, %v960
  %v962 = vsub.f32 1.0, %v961
  %v963 = vmul.f32 %v960, %v962
  %v964 = vadd.f32 %v960, %v963
  %vm965 = vweird.f32 %v926
  %vm966 = vweird.f32 %v960
  %vm967 = vmor %vm965, %vm966
  %v968 = vsel %vm967, %v960, %v964
  %v969 = vand.u32 2147483647, %v926
  %vm970 = vcmp.eq.f32.partialorder %v969, 8.507059e+37
  %v971 = vand.u32 %v926, 2147483648
  %v972 = vor.u32 1.1754944e-38, %v971
  %v973 = vsel %vm970, %v972, %v968
  %v974 = vmul.f32 %v908, %v973
  %v975 = vrcp.pop %v929
  %v976 = vmul.f32 %v929, %v975
  %v977 = vsub.f32 1.0, %v976
  %v978 = vmul.f32 %v975, %v977
  %v979 = vadd.f32 %v975, %v978
  %vm980 = vweird.f32 %v929
  %vm981 = vweird.f32 %v975
  %vm982 = vmor %vm980, %vm981
  %v983 = vsel %vm982, %v975, %v979
  %v984 = vand.u32 2147483647, %v929
  %vm985 = vcmp.eq.f32.partialorder %v984, 8.507059e+37
  %v986 = vand.u32 %v929, 2147483648
  %v987 = vor.u32 1.1754944e-38, %v986
  %v988 = vsel %vm985, %v987, %v983
  %v989 = vmul.f32 %v910, %v988
  %v990 = vrcp.pop %v932
  %v991 = vmul.f32 %v932, %v990
  %v992 = vsub.f32 1.0, %v991
  %v993 = vmul.f32 %v990, %v992
  %v994 = vadd.f32 %v990, %v993
  %vm995 = vweird.f32 %v932
  %vm996 = vweird.f32 %v990
  %vm997 = vmor %vm995, %vm996
  %v998 = vsel %vm997, %v990, %v994
  %v999 = vand.u32 2147483647, %v932
  %vm1000 = vcmp.eq.f32.partialorder %v999, 8.507059e+37
  %v1001 = vand.u32 %v932, 2147483648
  %v1002 = vor.u32 1.1754944e-38, %v1001
  %v1003 = vsel %vm1000, %v1002, %v998
  %v1004 = vmul.f32 %v912, %v1003
  %v1005 = vrcp.pop %v935
  %v1006 = vmul.f32 %v935, %v1005
  %v1007 = vsub.f32 1.0, %v1006
  %v1008 = vmul.f32 %v1005, %v1007
  %v1009 = vadd.f32 %v1005, %v1008
  %vm1010 = vweird.f32 %v935
  %vm1011 = vweird.f32 %v1005
  %vm1012 = vmor %vm1010, %vm1011
  %v1013 = vsel %vm1012, %v1005, %v1009
  %v1014 = vand.u32 2147483647, %v935
  %vm1015 = vcmp.eq.f32.partialorder %v1014, 8.507059e+37
  %v1016 = vand.u32 %v935, 2147483648
  %v1017 = vor.u32 1.1754944e-38, %v1016
  %v1018 = vsel %vm1015, %v1017, %v1013
  %v1019 = vmul.f32 %v914, %v1018
  %v1020 = vrcp.pop %v938
  %v1021 = vmul.f32 %v938, %v1020
  %v1022 = vsub.f32 1.0, %v1021
  %v1023 = vmul.f32 %v1020, %v1022
  %v1024 = vadd.f32 %v1020, %v1023
  %vm1025 = vweird.f32 %v938
  %vm1026 = vweird.f32 %v1020
  %vm1027 = vmor %vm1025, %vm1026
  %v1028 = vsel %vm1027, %v1020, %v1024
  %v1029 = vand.u32 2147483647, %v938
  %vm1030 = vcmp.eq.f32.partialorder %v1029, 8.507059e+37
  %v1031 = vand.u32 %v938, 2147483648
  %v1032 = vor.u32 1.1754944e-38, %v1031
  %v1033 = vsel %vm1030, %v1032, %v1028
  %v1034 = vmul.f32 %v916, %v1033
  %v1035 = vrcp.pop %v941
  %v1036 = vmul.f32 %v941, %v1035
  %v1037 = vsub.f32 1.0, %v1036
  %v1038 = vmul.f32 %v1035, %v1037
  %v1039 = vadd.f32 %v1035, %v1038
  %vm1040 = vweird.f32 %v941
  %vm1041 = vweird.f32 %v1035
  %vm1042 = vmor %vm1040, %vm1041
  %v1043 = vsel %vm1042, %v1035, %v1039
  %v1044 = vand.u32 2147483647, %v941
  %vm1045 = vcmp.eq.f32.partialorder %v1044, 8.507059e+37
  %v1046 = vand.u32 %v941, 2147483648
  %v1047 = vor.u32 1.1754944e-38, %v1046
  %v1048 = vsel %vm1045, %v1047, %v1043
  %v1049 = vmul.f32 %v918, %v1048
  %v1050 = vrcp.pop %v944
  %v1051 = vmul.f32 %v944, %v1050
  %v1052 = vsub.f32 1.0, %v1051
  %v1053 = vmul.f32 %v1050, %v1052
  %v1054 = vadd.f32 %v1050, %v1053
  %vm1055 = vweird.f32 %v944
  %vm1056 = vweird.f32 %v1050
  %vm1057 = vmor %vm1055, %vm1056
  %v1058 = vsel %vm1057, %v1050, %v1054
  %v1059 = vand.u32 2147483647, %v944
  %vm1060 = vcmp.eq.f32.partialorder %v1059, 8.507059e+37
  %v1061 = vand.u32 %v944, 2147483648
  %v1062 = vor.u32 1.1754944e-38, %v1061
  %v1063 = vsel %vm1060, %v1062, %v1058
  %v1064 = vmul.f32 %v920, %v1063
  %v1066 = vsel %vm470, %v959, 0
  %v1069 = vsel %vm470, %v974, 0
  %v1072 = vsel %vm470, %v989, 0
  %v1075 = vsel %vm470, %v1004, 0
  %v1078 = vsel %vm470, %v1019, 0
  %v1081 = vsel %vm470, %v1034, 0
  %v1084 = vsel %vm470, %v1049, 0
  %v1087 = vsel %vm470, %v1064, 0
  %1089 = vmatpush.msra.mxu0 0.0
  %1090 = vmatpush.msra.mxu0 0.0
  %1091 = vmatpush.msra.mxu0 0.0
  %1092 = vmatpush.msra.mxu0 0.0
  %1093 = vmatpush.msra.mxu0 0.0
  %1094 = vmatpush.msra.mxu0 0.0
  %1095 = vmatpush.msra.mxu0 0.0
  %1096 = vmatpush.msra.mxu0 0.0
  %1097 = vmatpush.msra.mxu0 %v217
  %1098 = vmatpush.msra.mxu0 %v214
  %1099 = vmatpush.msra.mxu0 %v211
  %1100 = vmatpush.msra.mxu0 %v208
  %1101 = vmatpush.msra.mxu0 %v205
  %1102 = vmatpush.msra.mxu0 %v202
  %1103 = vmatpush.msra.mxu0 %v199
  %1104 = vmatpush.msra.mxu0 %v196
  %1105 = vmatmul.f32.gmra.mxu0 %v1066
  %v1106 = vpop.f32.mrf.mxu0
  %v1107 = vadd.f32 0.0, %v1106
  %1108 = vmatmul.f32.gmra.mxu0 %v1069
  %v1109 = vpop.f32.mrf.mxu0
  %v1110 = vadd.f32 0.0, %v1109
  %1111 = vmatmul.f32.gmra.mxu0 %v1072
  %v1112 = vpop.f32.mrf.mxu0
  %v1113 = vadd.f32 0.0, %v1112
  %1114 = vmatmul.f32.gmra.mxu0 %v1075
  %v1115 = vpop.f32.mrf.mxu0
  %v1116 = vadd.f32 0.0, %v1115
  %1117 = vmatmul.f32.gmra.mxu0 %v1078
  %v1118 = vpop.f32.mrf.mxu0
  %v1119 = vadd.f32 0.0, %v1118
  %1120 = vmatmul.f32.gmra.mxu0 %v1081
  %v1121 = vpop.f32.mrf.mxu0
  %v1122 = vadd.f32 0.0, %v1121
  %1123 = vmatmul.f32.gmra.mxu0 %v1084
  %v1124 = vpop.f32.mrf.mxu0
  %v1125 = vadd.f32 0.0, %v1124
  %1126 = vmatmul.f32.gmra.mxu0 %v1087
  %v1127 = vpop.f32.mrf.mxu0
  %v1128 = vadd.f32 0.0, %v1127
  %1129 = vdwg.mxu0
  %1130 = vst.msk [vmem:[#allocation2 + $0x40] sm:$0xff] %vm219, %v1107
  %1131 = vst.msk [vmem:[#allocation2 + $0x48] sm:$0xff] %vm219, %v1110
  %1132 = vst.msk [vmem:[#allocation2 + $0x50] sm:$0xff] %vm219, %v1113
  %1133 = vst.msk [vmem:[#allocation2 + $0x58] sm:$0xff] %vm219, %v1116
  %1134 = vst.msk [vmem:[#allocation2 + $0x60] sm:$0xff] %vm219, %v1119
  %1135 = vst.msk [vmem:[#allocation2 + $0x68] sm:$0xff] %vm219, %v1122
  %1136 = vst.msk [vmem:[#allocation2 + $0x70] sm:$0xff] %vm219, %v1125
  %1137 = vst.msk [vmem:[#allocation2 + $0x78] sm:$0xff] %vm219, %v1128
  %v1138 = vld [vmem:[#allocation2] sm:$0xff]
  %v1139 = vld [vmem:[#allocation2 + $0x8] sm:$0xff]
  %v1140 = vld [vmem:[#allocation2 + $0x10] sm:$0xff]
  %v1141 = vld [vmem:[#allocation2 + $0x18] sm:$0xff]
  %v1142 = vld [vmem:[#allocation2 + $0x20] sm:$0xff]
  %v1143 = vld [vmem:[#allocation2 + $0x28] sm:$0xff]
  %v1144 = vld [vmem:[#allocation2 + $0x30] sm:$0xff]
  %v1145 = vld [vmem:[#allocation2 + $0x38] sm:$0xff]
  %v1146 = vld [vmem:[#allocation2 + $0x40] sm:$0xff]
  %v1147 = vld [vmem:[#allocation2 + $0x48] sm:$0xff]
  %v1148 = vld [vmem:[#allocation2 + $0x50] sm:$0xff]
  %v1149 = vld [vmem:[#allocation2 + $0x58] sm:$0xff]
  %v1150 = vld [vmem:[#allocation2 + $0x60] sm:$0xff]
  %v1151 = vld [vmem:[#allocation2 + $0x68] sm:$0xff]
  %v1152 = vld [vmem:[#allocation2 + $0x70] sm:$0xff]
  %v1153 = vld [vmem:[#allocation2 + $0x78] sm:$0xff]
  %v1154 = vld [vmem:[%s4] sm:$0xff]
  %v1155 = vld [vmem:[%s4 + $0x8] sm:$0xff]
  %v1156 = vld [vmem:[%s4 + $0x10] sm:$0xff]
  %v1157 = vld [vmem:[%s4 + $0x18] sm:$0xff]
  %v1158 = vld [vmem:[%s4 + $0x20] sm:$0xff]
  %v1159 = vld [vmem:[%s4 + $0x28] sm:$0xff]
  %v1160 = vld [vmem:[%s4 + $0x30] sm:$0xff]
  %v1161 = vld [vmem:[%s4 + $0x38] sm:$0xff]
  %v1162 = vld [vmem:[%s4 + $0x40] sm:$0xff]
  %v1163 = vld [vmem:[%s4 + $0x48] sm:$0xff]
  %v1164 = vld [vmem:[%s4 + $0x50] sm:$0xff]
  %v1165 = vld [vmem:[%s4 + $0x58] sm:$0xff]
  %v1166 = vld [vmem:[%s5] sm:$0xff]
  %v1167 = vld [vmem:[%s5 + $0x8] sm:$0xff]
  %v1168 = vld [vmem:[%s5 + $0x10] sm:$0xff]
  %v1169 = vld [vmem:[%s5 + $0x18] sm:$0xff]
  %v1170 = vld [vmem:[%s5 + $0x20] sm:$0xff]
  %v1171 = vld [vmem:[%s5 + $0x28] sm:$0xff]
  %v1172 = vld [vmem:[%s5 + $0x30] sm:$0xff]
  %v1173 = vld [vmem:[%s5 + $0x38] sm:$0xff]
  %v1174 = vld [vmem:[%s5 + $0x40] sm:$0xff]
  %v1175 = vld [vmem:[%s5 + $0x48] sm:$0xff]
  %v1176 = vld [vmem:[%s5 + $0x50] sm:$0xff]
  %v1177 = vld [vmem:[%s5 + $0x58] sm:$0xff]
  %v1179 = vsel %vm219, %v1138, 0
  %v1182 = vsel %vm219, %v1139, 0
  %v1185 = vsel %vm219, %v1140, 0
  %v1188 = vsel %vm219, %v1141, 0
  %v1191 = vsel %vm219, %v1142, 0
  %v1194 = vsel %vm219, %v1143, 0
  %v1197 = vsel %vm219, %v1144, 0
  %v1200 = vsel %vm219, %v1145, 0
  %v1203 = vsel %vm219, %v1146, 0
  %v1206 = vsel %vm219, %v1147, 0
  %v1209 = vsel %vm219, %v1148, 0
  %v1212 = vsel %vm219, %v1149, 0
  %v1215 = vsel %vm219, %v1150, 0
  %v1218 = vsel %vm219, %v1151, 0
  %v1221 = vsel %vm219, %v1152, 0
  %v1224 = vsel %vm219, %v1153, 0
  %1226 = vmatpush.msra.mxu0 0.0
  %1227 = vmatpush.msra.mxu0 0.0
  %1228 = vmatpush.msra.mxu0 0.0
  %1229 = vmatpush.msra.mxu0 0.0
  %1230 = vmatpush.msra.mxu0 %v1165
  %1231 = vmatpush.msra.mxu0 %v1164
  %1232 = vmatpush.msra.mxu0 %v1163
  %1233 = vmatpush.msra.mxu0 %v1162
  %1234 = vmatpush.msra.mxu0 %v1161
  %1235 = vmatpush.msra.mxu0 %v1160
  %1236 = vmatpush.msra.mxu0 %v1159
  %1237 = vmatpush.msra.mxu0 %v1158
  %1238 = vmatpush.msra.mxu0 %v1157
  %1239 = vmatpush.msra.mxu0 %v1156
  %1240 = vmatpush.msra.mxu0 %v1155
  %1241 = vmatpush.msra.mxu0 %v1154
  %1242 = vmatmul.f32.gmra.mxu0 %v1179
  %v1243 = vpop.f32.mrf.mxu0
  %v1244 = vadd.f32 0.0, %v1243
  %1245 = vmatmul.f32.gmra.mxu0 %v1182
  %v1246 = vpop.f32.mrf.mxu0
  %v1247 = vadd.f32 0.0, %v1246
  %1248 = vmatmul.f32.gmra.mxu0 %v1185
  %v1249 = vpop.f32.mrf.mxu0
  %v1250 = vadd.f32 0.0, %v1249
  %1251 = vmatmul.f32.gmra.mxu0 %v1188
  %v1252 = vpop.f32.mrf.mxu0
  %v1253 = vadd.f32 0.0, %v1252
  %1254 = vmatmul.f32.gmra.mxu0 %v1191
  %v1255 = vpop.f32.mrf.mxu0
  %v1256 = vadd.f32 0.0, %v1255
  %1257 = vmatmul.f32.gmra.mxu0 %v1194
  %v1258 = vpop.f32.mrf.mxu0
  %v1259 = vadd.f32 0.0, %v1258
  %1260 = vmatmul.f32.gmra.mxu0 %v1197
  %v1261 = vpop.f32.mrf.mxu0
  %v1262 = vadd.f32 0.0, %v1261
  %1263 = vmatmul.f32.gmra.mxu0 %v1200
  %v1264 = vpop.f32.mrf.mxu0
  %v1265 = vadd.f32 0.0, %v1264
  %1266 = vmatmul.f32.gmra.mxu0 %v1203
  %v1267 = vpop.f32.mrf.mxu0
  %v1268 = vadd.f32 0.0, %v1267
  %1269 = vmatmul.f32.gmra.mxu0 %v1206
  %v1270 = vpop.f32.mrf.mxu0
  %v1271 = vadd.f32 0.0, %v1270
  %1272 = vmatmul.f32.gmra.mxu0 %v1209
  %v1273 = vpop.f32.mrf.mxu0
  %v1274 = vadd.f32 0.0, %v1273
  %1275 = vmatmul.f32.gmra.mxu0 %v1212
  %v1276 = vpop.f32.mrf.mxu0
  %v1277 = vadd.f32 0.0, %v1276
  %1278 = vmatmul.f32.gmra.mxu0 %v1215
  %v1279 = vpop.f32.mrf.mxu0
  %v1280 = vadd.f32 0.0, %v1279
  %1281 = vmatmul.f32.gmra.mxu0 %v1218
  %v1282 = vpop.f32.mrf.mxu0
  %v1283 = vadd.f32 0.0, %v1282
  %1284 = vmatmul.f32.gmra.mxu0 %v1221
  %v1285 = vpop.f32.mrf.mxu0
  %v1286 = vadd.f32 0.0, %v1285
  %1287 = vmatmul.f32.gmra.mxu0 %v1224
  %v1288 = vpop.f32.mrf.mxu0
  %v1289 = vadd.f32 0.0, %v1288
  %1290 = vdwg.mxu0
  %v1292 = vsel %vm219, %v1244, 0
  %v1295 = vsel %vm219, %v1247, 0
  %v1298 = vsel %vm219, %v1250, 0
  %v1301 = vsel %vm219, %v1253, 0
  %v1304 = vsel %vm219, %v1256, 0
  %v1307 = vsel %vm219, %v1259, 0
  %v1310 = vsel %vm219, %v1262, 0
  %v1313 = vsel %vm219, %v1265, 0
  %v1316 = vsel %vm219, %v1268, 0
  %v1319 = vsel %vm219, %v1271, 0
  %v1322 = vsel %vm219, %v1274, 0
  %v1325 = vsel %vm219, %v1277, 0
  %v1328 = vsel %vm219, %v1280, 0
  %v1331 = vsel %vm219, %v1283, 0
  %v1334 = vsel %vm219, %v1286, 0
  %v1337 = vsel %vm219, %v1289, 0
  %1339 = vmatpush.msra.mxu0 0.0
  %1340 = vmatpush.msra.mxu0 0.0
  %1341 = vmatpush.msra.mxu0 0.0
  %1342 = vmatpush.msra.mxu0 0.0
  %1343 = vmatpush.msra.mxu0 %v1177
  %1344 = vmatpush.msra.mxu0 %v1176
  %1345 = vmatpush.msra.mxu0 %v1175
  %1346 = vmatpush.msra.mxu0 %v1174
  %1347 = vmatpush.msra.mxu0 %v1173
  %1348 = vmatpush.msra.mxu0 %v1172
  %1349 = vmatpush.msra.mxu0 %v1171
  %1350 = vmatpush.msra.mxu0 %v1170
  %1351 = vmatpush.msra.mxu0 %v1169
  %1352 = vmatpush.msra.mxu0 %v1168
  %1353 = vmatpush.msra.mxu0 %v1167
  %1354 = vmatpush.msra.mxu0 %v1166
  %1355 = vmatmul.f32.gmra.mxu0 %v1292
  %v1356 = vpop.f32.mrf.mxu0
  %v1357 = vadd.f32 0.0, %v1356
  %1358 = vmatmul.f32.gmra.mxu0 %v1295
  %v1359 = vpop.f32.mrf.mxu0
  %v1360 = vadd.f32 0.0, %v1359
  %1361 = vmatmul.f32.gmra.mxu0 %v1298
  %v1362 = vpop.f32.mrf.mxu0
  %v1363 = vadd.f32 0.0, %v1362
  %1364 = vmatmul.f32.gmra.mxu0 %v1301
  %v1365 = vpop.f32.mrf.mxu0
  %v1366 = vadd.f32 0.0, %v1365
  %1367 = vmatmul.f32.gmra.mxu0 %v1304
  %v1368 = vpop.f32.mrf.mxu0
  %v1369 = vadd.f32 0.0, %v1368
  %1370 = vmatmul.f32.gmra.mxu0 %v1307
  %v1371 = vpop.f32.mrf.mxu0
  %v1372 = vadd.f32 0.0, %v1371
  %1373 = vmatmul.f32.gmra.mxu0 %v1310
  %v1374 = vpop.f32.mrf.mxu0
  %v1375 = vadd.f32 0.0, %v1374
  %1376 = vmatmul.f32.gmra.mxu0 %v1313
  %v1377 = vpop.f32.mrf.mxu0
  %v1378 = vadd.f32 0.0, %v1377
  %1379 = vmatmul.f32.gmra.mxu0 %v1316
  %v1380 = vpop.f32.mrf.mxu0
  %v1381 = vadd.f32 0.0, %v1380
  %1382 = vmatmul.f32.gmra.mxu0 %v1319
  %v1383 = vpop.f32.mrf.mxu0
  %v1384 = vadd.f32 0.0, %v1383
  %1385 = vmatmul.f32.gmra.mxu0 %v1322
  %v1386 = vpop.f32.mrf.mxu0
  %v1387 = vadd.f32 0.0, %v1386
  %1388 = vmatmul.f32.gmra.mxu0 %v1325
  %v1389 = vpop.f32.mrf.mxu0
  %v1390 = vadd.f32 0.0, %v1389
  %1391 = vmatmul.f32.gmra.mxu0 %v1328
  %v1392 = vpop.f32.mrf.mxu0
  %v1393 = vadd.f32 0.0, %v1392
  %1394 = vmatmul.f32.gmra.mxu0 %v1331
  %v1395 = vpop.f32.mrf.mxu0
  %v1396 = vadd.f32 0.0, %v1395
  %1397 = vmatmul.f32.gmra.mxu0 %v1334
  %v1398 = vpop.f32.mrf.mxu0
  %v1399 = vadd.f32 0.0, %v1398
  %1400 = vmatmul.f32.gmra.mxu0 %v1337
  %v1401 = vpop.f32.mrf.mxu0
  %v1402 = vadd.f32 0.0, %v1401
  %1403 = vdwg.mxu0
  %1412 = vrot.lane.b32.xlu0 %v1357, 127
  %v1413 = vpop.permute.xlu0 %1412
  %1414 = vrot.lane.b32.xlu0 %v1360, 127
  %v1415 = vpop.permute.xlu0 %1414
  %1416 = vrot.lane.b32.xlu0 %v1363, 127
  %v1417 = vpop.permute.xlu0 %1416
  %1418 = vrot.lane.b32.xlu0 %v1366, 127
  %v1419 = vpop.permute.xlu0 %1418
  %1420 = vrot.lane.b32.xlu0 %v1369, 127
  %v1421 = vpop.permute.xlu0 %1420
  %1422 = vrot.lane.b32.xlu0 %v1372, 127
  %v1423 = vpop.permute.xlu0 %1422
  %1424 = vrot.lane.b32.xlu0 %v1375, 127
  %v1425 = vpop.permute.xlu0 %1424
  %1426 = vrot.lane.b32.xlu0 %v1378, 127
  %v1427 = vpop.permute.xlu0 %1426
  %1436 = vxpose.xlu0.b32.start [1/16] %v1413, 128
  %1437 = vxpose.xlu0.b32.cont [2/16] %v1415, 128
  %1438 = vxpose.xlu0.b32.cont [3/16] %v1417, 128
  %1439 = vxpose.xlu0.b32.cont [4/16] %v1419, 128
  %1440 = vxpose.xlu0.b32.cont [5/16] %v1421, 128
  %1441 = vxpose.xlu0.b32.cont [6/16] %v1423, 128
  %1442 = vxpose.xlu0.b32.cont [7/16] %v1425, 128
  %1443 = vxpose.xlu0.b32.cont [8/16] %v1427, 128
  %1444 = vxpose.xlu0.b32.cont [9/16] 0.0, 128
  %1445 = vxpose.xlu0.b32.cont [10/16] 0.0, 128
  %1446 = vxpose.xlu0.b32.cont [11/16] 0.0, 128
  %1447 = vxpose.xlu0.b32.cont [12/16] 0.0, 128
  %1448 = vxpose.xlu0.b32.cont [13/16] 0.0, 128
  %1449 = vxpose.xlu0.b32.cont [14/16] 0.0, 128
  %1450 = vxpose.xlu0.b32.cont [15/16] 0.0, 128
  %1451 = vxpose.xlu0.b32.end [16/16] 0.0, 128
  %v1452 = vpop.trf.xlu0
  %v1453 = vpop.trf.xlu0
  %v1454 = vpop.trf.xlu0
  %v1455 = vpop.trf.xlu0
  %v1456 = vpop.trf.xlu0
  %v1457 = vpop.trf.xlu0
  %v1458 = vpop.trf.xlu0
  %v1459 = vpop.trf.xlu0
  %v1460 = vpop.trf.xlu0
  %v1461 = vpop.trf.xlu0
  %v1462 = vpop.trf.xlu0
  %v1463 = vpop.trf.xlu0
  %v1464 = vpop.trf.xlu0
  %v1465 = vpop.trf.xlu0
  %v1466 = vpop.trf.xlu0
  %v1467 = vpop.trf.xlu0
  %1468 = vset.pattern.permute.xlu0 0
  %1469 = vperm.xlu0 %1468, %v1357
  %v1470 = vpop.permute.xlu0 %1469
  %1472 = vset.pattern.permute.xlu0 0
  %1473 = vperm.xlu0 %1472, %v1360
  %v1474 = vpop.permute.xlu0 %1473
  %1476 = vset.pattern.permute.xlu0 0
  %1477 = vperm.xlu0 %1476, %v1363
  %v1478 = vpop.permute.xlu0 %1477
  %1480 = vset.pattern.permute.xlu0 0
  %1481 = vperm.xlu0 %1480, %v1366
  %v1482 = vpop.permute.xlu0 %1481
  %1484 = vset.pattern.permute.xlu0 0
  %1485 = vperm.xlu0 %1484, %v1369
  %v1486 = vpop.permute.xlu0 %1485
  %1488 = vset.pattern.permute.xlu0 0
  %1489 = vperm.xlu0 %1488, %v1372
  %v1490 = vpop.permute.xlu0 %1489
  %1492 = vset.pattern.permute.xlu0 0
  %1493 = vperm.xlu0 %1492, %v1375
  %v1494 = vpop.permute.xlu0 %1493
  %1496 = vset.pattern.permute.xlu0 0
  %1497 = vperm.xlu0 %1496, %v1378
  %v1498 = vpop.permute.xlu0 %1497
  %v1500 = vperm.slane %v1452, 0
  %v1501 = vadd.f32 %v1470, %v1500
  %v1502 = vadd.f32 %v1474, %v1500
  %v1503 = vadd.f32 %v1478, %v1500
  %v1504 = vadd.f32 %v1482, %v1500
  %v1505 = vadd.f32 %v1486, %v1500
  %v1506 = vadd.f32 %v1490, %v1500
  %v1507 = vadd.f32 %v1494, %v1500
  %v1508 = vadd.f32 %v1498, %v1500
  %vm1509 = vcmp.ge.f32.partialorder %v1501, 0.0
  %vm1510 = vcmp.ge.f32.partialorder %v1502, 0.0
  %vm1511 = vcmp.ge.f32.partialorder %v1503, 0.0
  %vm1512 = vcmp.ge.f32.partialorder %v1504, 0.0
  %vm1513 = vcmp.ge.f32.partialorder %v1505, 0.0
  %vm1514 = vcmp.ge.f32.partialorder %v1506, 0.0
  %vm1515 = vcmp.ge.f32.partialorder %v1507, 0.0
  %vm1516 = vcmp.ge.f32.partialorder %v1508, 0.0
  %v1517 = vmul.f32 %v1501, 0.01
  %v1518 = vmul.f32 %v1502, 0.01
  %v1519 = vmul.f32 %v1503, 0.01
  %v1520 = vmul.f32 %v1504, 0.01
  %v1521 = vmul.f32 %v1505, 0.01
  %v1522 = vmul.f32 %v1506, 0.01
  %v1523 = vmul.f32 %v1507, 0.01
  %v1524 = vmul.f32 %v1508, 0.01
  %v1525 = vsel %vm1509, %v1501, %v1517
  %v1526 = vsel %vm1510, %v1502, %v1518
  %v1527 = vsel %vm1511, %v1503, %v1519
  %v1528 = vsel %vm1512, %v1504, %v1520
  %v1529 = vsel %vm1513, %v1505, %v1521
  %v1530 = vsel %vm1514, %v1506, %v1522
  %v1531 = vsel %vm1515, %v1507, %v1523
  %v1532 = vsel %vm1516, %v1508, %v1524
  %v1533 = vsel %vm39, %v1525, -9e+15
  %v1534 = vsel %vm40, %v1526, -9e+15
  %v1535 = vsel %vm41, %v1527, -9e+15
  %v1536 = vsel %vm42, %v1528, -9e+15
  %v1537 = vsel %vm43, %v1529, -9e+15
  %v1538 = vsel %vm44, %v1530, -9e+15
  %v1539 = vsel %vm45, %v1531, -9e+15
  %v1540 = vsel %vm46, %v1532, -9e+15
  %v1541 = vsel %vm470, %v1533, -inf
  %1542 = vmax.xlane.f32.xlu0 %v1541
  %v1543 = vpop.xlane.xlu0 %1542
  %v1544 = vsel %vm470, %v1534, -inf
  %1545 = vmax.xlane.f32.xlu0 %v1544
  %v1546 = vpop.xlane.xlu0 %1545
  %v1547 = vsel %vm470, %v1535, -inf
  %1548 = vmax.xlane.f32.xlu0 %v1547
  %v1549 = vpop.xlane.xlu0 %1548
  %v1550 = vsel %vm470, %v1536, -inf
  %1551 = vmax.xlane.f32.xlu0 %v1550
  %v1552 = vpop.xlane.xlu0 %1551
  %v1553 = vsel %vm470, %v1537, -inf
  %1554 = vmax.xlane.f32.xlu0 %v1553
  %v1555 = vpop.xlane.xlu0 %1554
  %v1556 = vsel %vm470, %v1538, -inf
  %1557 = vmax.xlane.f32.xlu0 %v1556
  %v1558 = vpop.xlane.xlu0 %1557
  %v1559 = vsel %vm470, %v1539, -inf
  %1560 = vmax.xlane.f32.xlu0 %v1559
  %v1561 = vpop.xlane.xlu0 %1560
  %v1562 = vsel %vm470, %v1540, -inf
  %1563 = vmax.xlane.f32.xlu0 %v1562
  %v1564 = vpop.xlane.xlu0 %1563
  %v1565 = vsub.f32 %v1533, %v1543
  %v1566 = vsub.f32 %v1534, %v1546
  %v1567 = vsub.f32 %v1535, %v1549
  %v1568 = vsub.f32 %v1536, %v1552
  %v1569 = vsub.f32 %v1537, %v1555
  %v1570 = vsub.f32 %v1538, %v1558
  %v1571 = vsub.f32 %v1539, %v1561
  %v1572 = vsub.f32 %v1540, %v1564
  %v1573 = vmul.f32 %v1565, 1.442695
  %v1574 = vpow.pop %v1573
  %v1575 = vmul.f32 %v1566, 1.442695
  %v1576 = vpow.pop %v1575
  %v1577 = vmul.f32 %v1567, 1.442695
  %v1578 = vpow.pop %v1577
  %v1579 = vmul.f32 %v1568, 1.442695
  %v1580 = vpow.pop %v1579
  %v1581 = vmul.f32 %v1569, 1.442695
  %v1582 = vpow.pop %v1581
  %v1583 = vmul.f32 %v1570, 1.442695
  %v1584 = vpow.pop %v1583
  %v1585 = vmul.f32 %v1571, 1.442695
  %v1586 = vpow.pop %v1585
  %v1587 = vmul.f32 %v1572, 1.442695
  %v1588 = vpow.pop %v1587
  %v1589 = vsel %vm470, %v1574, 0.0
  %1590 = vadd.xlane.f32.xlu0 %v1589
  %v1591 = vpop.xlane.xlu0 %1590
  %v1592 = vsel %vm470, %v1576, 0.0
  %1593 = vadd.xlane.f32.xlu0 %v1592
  %v1594 = vpop.xlane.xlu0 %1593
  %v1595 = vsel %vm470, %v1578, 0.0
  %1596 = vadd.xlane.f32.xlu0 %v1595
  %v1597 = vpop.xlane.xlu0 %1596
  %v1598 = vsel %vm470, %v1580, 0.0
  %1599 = vadd.xlane.f32.xlu0 %v1598
  %v1600 = vpop.xlane.xlu0 %1599
  %v1601 = vsel %vm470, %v1582, 0.0
  %1602 = vadd.xlane.f32.xlu0 %v1601
  %v1603 = vpop.xlane.xlu0 %1602
  %v1604 = vsel %vm470, %v1584, 0.0
  %1605 = vadd.xlane.f32.xlu0 %v1604
  %v1606 = vpop.xlane.xlu0 %1605
  %v1607 = vsel %vm470, %v1586, 0.0
  %1608 = vadd.xlane.f32.xlu0 %v1607
  %v1609 = vpop.xlane.xlu0 %1608
  %v1610 = vsel %vm470, %v1588, 0.0
  %1611 = vadd.xlane.f32.xlu0 %v1610
  %v1612 = vpop.xlane.xlu0 %1611
  %v1613 = vrcp.pop %v1591
  %v1614 = vmul.f32 %v1591, %v1613
  %v1615 = vsub.f32 1.0, %v1614
  %v1616 = vmul.f32 %v1613, %v1615
  %v1617 = vadd.f32 %v1613, %v1616
  %vm1618 = vweird.f32 %v1591
  %vm1619 = vweird.f32 %v1613
  %vm1620 = vmor %vm1618, %vm1619
  %v1621 = vsel %vm1620, %v1613, %v1617
  %v1622 = vand.u32 2147483647, %v1591
  %vm1623 = vcmp.eq.f32.partialorder %v1622, 8.507059e+37
  %v1624 = vand.u32 %v1591, 2147483648
  %v1625 = vor.u32 1.1754944e-38, %v1624
  %v1626 = vsel %vm1623, %v1625, %v1621
  %v1627 = vmul.f32 %v1574, %v1626
  %v1628 = vrcp.pop %v1594
  %v1629 = vmul.f32 %v1594, %v1628
  %v1630 = vsub.f32 1.0, %v1629
  %v1631 = vmul.f32 %v1628, %v1630
  %v1632 = vadd.f32 %v1628, %v1631
  %vm1633 = vweird.f32 %v1594
  %vm1634 = vweird.f32 %v1628
  %vm1635 = vmor %vm1633, %vm1634
  %v1636 = vsel %vm1635, %v1628, %v1632
  %v1637 = vand.u32 2147483647, %v1594
  %vm1638 = vcmp.eq.f32.partialorder %v1637, 8.507059e+37
  %v1639 = vand.u32 %v1594, 2147483648
  %v1640 = vor.u32 1.1754944e-38, %v1639
  %v1641 = vsel %vm1638, %v1640, %v1636
  %v1642 = vmul.f32 %v1576, %v1641
  %v1643 = vrcp.pop %v1597
  %v1644 = vmul.f32 %v1597, %v1643
  %v1645 = vsub.f32 1.0, %v1644
  %v1646 = vmul.f32 %v1643, %v1645
  %v1647 = vadd.f32 %v1643, %v1646
  %vm1648 = vweird.f32 %v1597
  %vm1649 = vweird.f32 %v1643
  %vm1650 = vmor %vm1648, %vm1649
  %v1651 = vsel %vm1650, %v1643, %v1647
  %v1652 = vand.u32 2147483647, %v1597
  %vm1653 = vcmp.eq.f32.partialorder %v1652, 8.507059e+37
  %v1654 = vand.u32 %v1597, 2147483648
  %v1655 = vor.u32 1.1754944e-38, %v1654
  %v1656 = vsel %vm1653, %v1655, %v1651
  %v1657 = vmul.f32 %v1578, %v1656
  %v1658 = vrcp.pop %v1600
  %v1659 = vmul.f32 %v1600, %v1658
  %v1660 = vsub.f32 1.0, %v1659
  %v1661 = vmul.f32 %v1658, %v1660
  %v1662 = vadd.f32 %v1658, %v1661
  %vm1663 = vweird.f32 %v1600
  %vm1664 = vweird.f32 %v1658
  %vm1665 = vmor %vm1663, %vm1664
  %v1666 = vsel %vm1665, %v1658, %v1662
  %v1667 = vand.u32 2147483647, %v1600
  %vm1668 = vcmp.eq.f32.partialorder %v1667, 8.507059e+37
  %v1669 = vand.u32 %v1600, 2147483648
  %v1670 = vor.u32 1.1754944e-38, %v1669
  %v1671 = vsel %vm1668, %v1670, %v1666
  %v1672 = vmul.f32 %v1580, %v1671
  %v1673 = vrcp.pop %v1603
  %v1674 = vmul.f32 %v1603, %v1673
  %v1675 = vsub.f32 1.0, %v1674
  %v1676 = vmul.f32 %v1673, %v1675
  %v1677 = vadd.f32 %v1673, %v1676
  %vm1678 = vweird.f32 %v1603
  %vm1679 = vweird.f32 %v1673
  %vm1680 = vmor %vm1678, %vm1679
  %v1681 = vsel %vm1680, %v1673, %v1677
  %v1682 = vand.u32 2147483647, %v1603
  %vm1683 = vcmp.eq.f32.partialorder %v1682, 8.507059e+37
  %v1684 = vand.u32 %v1603, 2147483648
  %v1685 = vor.u32 1.1754944e-38, %v1684
  %v1686 = vsel %vm1683, %v1685, %v1681
  %v1687 = vmul.f32 %v1582, %v1686
  %v1688 = vrcp.pop %v1606
  %v1689 = vmul.f32 %v1606, %v1688
  %v1690 = vsub.f32 1.0, %v1689
  %v1691 = vmul.f32 %v1688, %v1690
  %v1692 = vadd.f32 %v1688, %v1691
  %vm1693 = vweird.f32 %v1606
  %vm1694 = vweird.f32 %v1688
  %vm1695 = vmor %vm1693, %vm1694
  %v1696 = vsel %vm1695, %v1688, %v1692
  %v1697 = vand.u32 2147483647, %v1606
  %vm1698 = vcmp.eq.f32.partialorder %v1697, 8.507059e+37
  %v1699 = vand.u32 %v1606, 2147483648
  %v1700 = vor.u32 1.1754944e-38, %v1699
  %v1701 = vsel %vm1698, %v1700, %v1696
  %v1702 = vmul.f32 %v1584, %v1701
  %v1703 = vrcp.pop %v1609
  %v1704 = vmul.f32 %v1609, %v1703
  %v1705 = vsub.f32 1.0, %v1704
  %v1706 = vmul.f32 %v1703, %v1705
  %v1707 = vadd.f32 %v1703, %v1706
  %vm1708 = vweird.f32 %v1609
  %vm1709 = vweird.f32 %v1703
  %vm1710 = vmor %vm1708, %vm1709
  %v1711 = vsel %vm1710, %v1703, %v1707
  %v1712 = vand.u32 2147483647, %v1609
  %vm1713 = vcmp.eq.f32.partialorder %v1712, 8.507059e+37
  %v1714 = vand.u32 %v1609, 2147483648
  %v1715 = vor.u32 1.1754944e-38, %v1714
  %v1716 = vsel %vm1713, %v1715, %v1711
  %v1717 = vmul.f32 %v1586, %v1716
  %v1718 = vrcp.pop %v1612
  %v1719 = vmul.f32 %v1612, %v1718
  %v1720 = vsub.f32 1.0, %v1719
  %v1721 = vmul.f32 %v1718, %v1720
  %v1722 = vadd.f32 %v1718, %v1721
  %vm1723 = vweird.f32 %v1612
  %vm1724 = vweird.f32 %v1718
  %vm1725 = vmor %vm1723, %vm1724
  %v1726 = vsel %vm1725, %v1718, %v1722
  %v1727 = vand.u32 2147483647, %v1612
  %vm1728 = vcmp.eq.f32.partialorder %v1727, 8.507059e+37
  %v1729 = vand.u32 %v1612, 2147483648
  %v1730 = vor.u32 1.1754944e-38, %v1729
  %v1731 = vsel %vm1728, %v1730, %v1726
  %v1732 = vmul.f32 %v1588, %v1731
  %v1734 = vsel %vm470, %v1627, 0
  %v1737 = vsel %vm470, %v1642, 0
  %v1740 = vsel %vm470, %v1657, 0
  %v1743 = vsel %vm470, %v1672, 0
  %v1746 = vsel %vm470, %v1687, 0
  %v1749 = vsel %vm470, %v1702, 0
  %v1752 = vsel %vm470, %v1717, 0
  %v1755 = vsel %vm470, %v1732, 0
  %1757 = vmatpush.msra.mxu0 0.0
  %1758 = vmatpush.msra.mxu0 0.0
  %1759 = vmatpush.msra.mxu0 0.0
  %1760 = vmatpush.msra.mxu0 0.0
  %1761 = vmatpush.msra.mxu0 0.0
  %1762 = vmatpush.msra.mxu0 0.0
  %1763 = vmatpush.msra.mxu0 0.0
  %1764 = vmatpush.msra.mxu0 0.0
  %1765 = vmatpush.msra.mxu0 %v1265
  %1766 = vmatpush.msra.mxu0 %v1262
  %1767 = vmatpush.msra.mxu0 %v1259
  %1768 = vmatpush.msra.mxu0 %v1256
  %1769 = vmatpush.msra.mxu0 %v1253
  %1770 = vmatpush.msra.mxu0 %v1250
  %1771 = vmatpush.msra.mxu0 %v1247
  %1772 = vmatpush.msra.mxu0 %v1244
  %1773 = vmatmul.f32.gmra.mxu0 %v1734
  %v1774 = vpop.f32.mrf.mxu0
  %v1775 = vadd.f32 0.0, %v1774
  %1776 = vmatmul.f32.gmra.mxu0 %v1737
  %v1777 = vpop.f32.mrf.mxu0
  %v1778 = vadd.f32 0.0, %v1777
  %1779 = vmatmul.f32.gmra.mxu0 %v1740
  %v1780 = vpop.f32.mrf.mxu0
  %v1781 = vadd.f32 0.0, %v1780
  %1782 = vmatmul.f32.gmra.mxu0 %v1743
  %v1783 = vpop.f32.mrf.mxu0
  %v1784 = vadd.f32 0.0, %v1783
  %1785 = vmatmul.f32.gmra.mxu0 %v1746
  %v1786 = vpop.f32.mrf.mxu0
  %v1787 = vadd.f32 0.0, %v1786
  %1788 = vmatmul.f32.gmra.mxu0 %v1749
  %v1789 = vpop.f32.mrf.mxu0
  %v1790 = vadd.f32 0.0, %v1789
  %1791 = vmatmul.f32.gmra.mxu0 %v1752
  %v1792 = vpop.f32.mrf.mxu0
  %v1793 = vadd.f32 0.0, %v1792
  %1794 = vmatmul.f32.gmra.mxu0 %v1755
  %v1795 = vpop.f32.mrf.mxu0
  %v1796 = vadd.f32 0.0, %v1795
  %1797 = vdwg.mxu0
  %1798 = vst.msk [vmem:[%s6] sm:$0xff] %vm219, %v1775
  %1799 = vst.msk [vmem:[%s6 + $0x8] sm:$0xff] %vm219, %v1778
  %1800 = vst.msk [vmem:[%s6 + $0x10] sm:$0xff] %vm219, %v1781
  %1801 = vst.msk [vmem:[%s6 + $0x18] sm:$0xff] %vm219, %v1784
  %1802 = vst.msk [vmem:[%s6 + $0x20] sm:$0xff] %vm219, %v1787
  %1803 = vst.msk [vmem:[%s6 + $0x28] sm:$0xff] %vm219, %v1790
  %1804 = vst.msk [vmem:[%s6 + $0x30] sm:$0xff] %vm219, %v1793
  %1805 = vst.msk [vmem:[%s6 + $0x38] sm:$0xff] %vm219, %v1796
  %1814 = vrot.lane.b32.xlu0 %v1381, 127
  %v1815 = vpop.permute.xlu0 %1814
  %1816 = vrot.lane.b32.xlu0 %v1384, 127
  %v1817 = vpop.permute.xlu0 %1816
  %1818 = vrot.lane.b32.xlu0 %v1387, 127
  %v1819 = vpop.permute.xlu0 %1818
  %1820 = vrot.lane.b32.xlu0 %v1390, 127
  %v1821 = vpop.permute.xlu0 %1820
  %1822 = vrot.lane.b32.xlu0 %v1393, 127
  %v1823 = vpop.permute.xlu0 %1822
  %1824 = vrot.lane.b32.xlu0 %v1396, 127
  %v1825 = vpop.permute.xlu0 %1824
  %1826 = vrot.lane.b32.xlu0 %v1399, 127
  %v1827 = vpop.permute.xlu0 %1826
  %1828 = vrot.lane.b32.xlu0 %v1402, 127
  %v1829 = vpop.permute.xlu0 %1828
  %1838 = vxpose.xlu0.b32.start [1/16] %v1815, 128
  %1839 = vxpose.xlu0.b32.cont [2/16] %v1817, 128
  %1840 = vxpose.xlu0.b32.cont [3/16] %v1819, 128
  %1841 = vxpose.xlu0.b32.cont [4/16] %v1821, 128
  %1842 = vxpose.xlu0.b32.cont [5/16] %v1823, 128
  %1843 = vxpose.xlu0.b32.cont [6/16] %v1825, 128
  %1844 = vxpose.xlu0.b32.cont [7/16] %v1827, 128
  %1845 = vxpose.xlu0.b32.cont [8/16] %v1829, 128
  %1846 = vxpose.xlu0.b32.cont [9/16] 0.0, 128
  %1847 = vxpose.xlu0.b32.cont [10/16] 0.0, 128
  %1848 = vxpose.xlu0.b32.cont [11/16] 0.0, 128
  %1849 = vxpose.xlu0.b32.cont [12/16] 0.0, 128
  %1850 = vxpose.xlu0.b32.cont [13/16] 0.0, 128
  %1851 = vxpose.xlu0.b32.cont [14/16] 0.0, 128
  %1852 = vxpose.xlu0.b32.cont [15/16] 0.0, 128
  %1853 = vxpose.xlu0.b32.end [16/16] 0.0, 128
  %v1854 = vpop.trf.xlu0
  %v1855 = vpop.trf.xlu0
  %v1856 = vpop.trf.xlu0
  %v1857 = vpop.trf.xlu0
  %v1858 = vpop.trf.xlu0
  %v1859 = vpop.trf.xlu0
  %v1860 = vpop.trf.xlu0
  %v1861 = vpop.trf.xlu0
  %v1862 = vpop.trf.xlu0
  %v1863 = vpop.trf.xlu0
  %v1864 = vpop.trf.xlu0
  %v1865 = vpop.trf.xlu0
  %v1866 = vpop.trf.xlu0
  %v1867 = vpop.trf.xlu0
  %v1868 = vpop.trf.xlu0
  %v1869 = vpop.trf.xlu0
  %1870 = vset.pattern.permute.xlu0 0
  %1871 = vperm.xlu0 %1870, %v1381
  %v1872 = vpop.permute.xlu0 %1871
  %1874 = vset.pattern.permute.xlu0 0
  %1875 = vperm.xlu0 %1874, %v1384
  %v1876 = vpop.permute.xlu0 %1875
  %1878 = vset.pattern.permute.xlu0 0
  %1879 = vperm.xlu0 %1878, %v1387
  %v1880 = vpop.permute.xlu0 %1879
  %1882 = vset.pattern.permute.xlu0 0
  %1883 = vperm.xlu0 %1882, %v1390
  %v1884 = vpop.permute.xlu0 %1883
  %1886 = vset.pattern.permute.xlu0 0
  %1887 = vperm.xlu0 %1886, %v1393
  %v1888 = vpop.permute.xlu0 %1887
  %1890 = vset.pattern.permute.xlu0 0
  %1891 = vperm.xlu0 %1890, %v1396
  %v1892 = vpop.permute.xlu0 %1891
  %1894 = vset.pattern.permute.xlu0 0
  %1895 = vperm.xlu0 %1894, %v1399
  %v1896 = vpop.permute.xlu0 %1895
  %1898 = vset.pattern.permute.xlu0 0
  %1899 = vperm.xlu0 %1898, %v1402
  %v1900 = vpop.permute.xlu0 %1899
  %v1902 = vperm.slane %v1854, 0
  %v1903 = vadd.f32 %v1872, %v1902
  %v1904 = vadd.f32 %v1876, %v1902
  %v1905 = vadd.f32 %v1880, %v1902
  %v1906 = vadd.f32 %v1884, %v1902
  %v1907 = vadd.f32 %v1888, %v1902
  %v1908 = vadd.f32 %v1892, %v1902
  %v1909 = vadd.f32 %v1896, %v1902
  %v1910 = vadd.f32 %v1900, %v1902
  %vm1911 = vcmp.ge.f32.partialorder %v1903, 0.0
  %vm1912 = vcmp.ge.f32.partialorder %v1904, 0.0
  %vm1913 = vcmp.ge.f32.partialorder %v1905, 0.0
  %vm1914 = vcmp.ge.f32.partialorder %v1906, 0.0
  %vm1915 = vcmp.ge.f32.partialorder %v1907, 0.0
  %vm1916 = vcmp.ge.f32.partialorder %v1908, 0.0
  %vm1917 = vcmp.ge.f32.partialorder %v1909, 0.0
  %vm1918 = vcmp.ge.f32.partialorder %v1910, 0.0
  %v1919 = vmul.f32 %v1903, 0.01
  %v1920 = vmul.f32 %v1904, 0.01
  %v1921 = vmul.f32 %v1905, 0.01
  %v1922 = vmul.f32 %v1906, 0.01
  %v1923 = vmul.f32 %v1907, 0.01
  %v1924 = vmul.f32 %v1908, 0.01
  %v1925 = vmul.f32 %v1909, 0.01
  %v1926 = vmul.f32 %v1910, 0.01
  %v1927 = vsel %vm1911, %v1903, %v1919
  %v1928 = vsel %vm1912, %v1904, %v1920
  %v1929 = vsel %vm1913, %v1905, %v1921
  %v1930 = vsel %vm1914, %v1906, %v1922
  %v1931 = vsel %vm1915, %v1907, %v1923
  %v1932 = vsel %vm1916, %v1908, %v1924
  %v1933 = vsel %vm1917, %v1909, %v1925
  %v1934 = vsel %vm1918, %v1910, %v1926
  %v1935 = vsel %vm64, %v1927, -9e+15
  %v1936 = vsel %vm65, %v1928, -9e+15
  %v1937 = vsel %vm66, %v1929, -9e+15
  %v1938 = vsel %vm67, %v1930, -9e+15
  %v1939 = vsel %vm68, %v1931, -9e+15
  %v1940 = vsel %vm69, %v1932, -9e+15
  %v1941 = vsel %vm70, %v1933, -9e+15
  %v1942 = vsel %vm71, %v1934, -9e+15
  %v1943 = vsel %vm470, %v1935, -inf
  %1944 = vmax.xlane.f32.xlu0 %v1943
  %v1945 = vpop.xlane.xlu0 %1944
  %v1946 = vsel %vm470, %v1936, -inf
  %1947 = vmax.xlane.f32.xlu0 %v1946
  %v1948 = vpop.xlane.xlu0 %1947
  %v1949 = vsel %vm470, %v1937, -inf
  %1950 = vmax.xlane.f32.xlu0 %v1949
  %v1951 = vpop.xlane.xlu0 %1950
  %v1952 = vsel %vm470, %v1938, -inf
  %1953 = vmax.xlane.f32.xlu0 %v1952
  %v1954 = vpop.xlane.xlu0 %1953
  %v1955 = vsel %vm470, %v1939, -inf
  %1956 = vmax.xlane.f32.xlu0 %v1955
  %v1957 = vpop.xlane.xlu0 %1956
  %v1958 = vsel %vm470, %v1940, -inf
  %1959 = vmax.xlane.f32.xlu0 %v1958
  %v1960 = vpop.xlane.xlu0 %1959
  %v1961 = vsel %vm470, %v1941, -inf
  %1962 = vmax.xlane.f32.xlu0 %v1961
  %v1963 = vpop.xlane.xlu0 %1962
  %v1964 = vsel %vm470, %v1942, -inf
  %1965 = vmax.xlane.f32.xlu0 %v1964
  %v1966 = vpop.xlane.xlu0 %1965
  %v1967 = vsub.f32 %v1935, %v1945
  %v1968 = vsub.f32 %v1936, %v1948
  %v1969 = vsub.f32 %v1937, %v1951
  %v1970 = vsub.f32 %v1938, %v1954
  %v1971 = vsub.f32 %v1939, %v1957
  %v1972 = vsub.f32 %v1940, %v1960
  %v1973 = vsub.f32 %v1941, %v1963
  %v1974 = vsub.f32 %v1942, %v1966
  %v1975 = vmul.f32 %v1967, 1.442695
  %v1976 = vpow.pop %v1975
  %v1977 = vmul.f32 %v1968, 1.442695
  %v1978 = vpow.pop %v1977
  %v1979 = vmul.f32 %v1969, 1.442695
  %v1980 = vpow.pop %v1979
  %v1981 = vmul.f32 %v1970, 1.442695
  %v1982 = vpow.pop %v1981
  %v1983 = vmul.f32 %v1971, 1.442695
  %v1984 = vpow.pop %v1983
  %v1985 = vmul.f32 %v1972, 1.442695
  %v1986 = vpow.pop %v1985
  %v1987 = vmul.f32 %v1973, 1.442695
  %v1988 = vpow.pop %v1987
  %v1989 = vmul.f32 %v1974, 1.442695
  %v1990 = vpow.pop %v1989
  %v1991 = vsel %vm470, %v1976, 0.0
  %1992 = vadd.xlane.f32.xlu0 %v1991
  %v1993 = vpop.xlane.xlu0 %1992
  %v1994 = vsel %vm470, %v1978, 0.0
  %1995 = vadd.xlane.f32.xlu0 %v1994
  %v1996 = vpop.xlane.xlu0 %1995
  %v1997 = vsel %vm470, %v1980, 0.0
  %1998 = vadd.xlane.f32.xlu0 %v1997
  %v1999 = vpop.xlane.xlu0 %1998
  %v2000 = vsel %vm470, %v1982, 0.0
  %2001 = vadd.xlane.f32.xlu0 %v2000
  %v2002 = vpop.xlane.xlu0 %2001
  %v2003 = vsel %vm470, %v1984, 0.0
  %2004 = vadd.xlane.f32.xlu0 %v2003
  %v2005 = vpop.xlane.xlu0 %2004
  %v2006 = vsel %vm470, %v1986, 0.0
  %2007 = vadd.xlane.f32.xlu0 %v2006
  %v2008 = vpop.xlane.xlu0 %2007
  %v2009 = vsel %vm470, %v1988, 0.0
  %2010 = vadd.xlane.f32.xlu0 %v2009
  %v2011 = vpop.xlane.xlu0 %2010
  %v2012 = vsel %vm470, %v1990, 0.0
  %2013 = vadd.xlane.f32.xlu0 %v2012
  %v2014 = vpop.xlane.xlu0 %2013
  %v2015 = vrcp.pop %v1993
  %v2016 = vmul.f32 %v1993, %v2015
  %v2017 = vsub.f32 1.0, %v2016
  %v2018 = vmul.f32 %v2015, %v2017
  %v2019 = vadd.f32 %v2015, %v2018
  %vm2020 = vweird.f32 %v1993
  %vm2021 = vweird.f32 %v2015
  %vm2022 = vmor %vm2020, %vm2021
  %v2023 = vsel %vm2022, %v2015, %v2019
  %v2024 = vand.u32 2147483647, %v1993
  %vm2025 = vcmp.eq.f32.partialorder %v2024, 8.507059e+37
  %v2026 = vand.u32 %v1993, 2147483648
  %v2027 = vor.u32 1.1754944e-38, %v2026
  %v2028 = vsel %vm2025, %v2027, %v2023
  %v2029 = vmul.f32 %v1976, %v2028
  %v2030 = vrcp.pop %v1996
  %v2031 = vmul.f32 %v1996, %v2030
  %v2032 = vsub.f32 1.0, %v2031
  %v2033 = vmul.f32 %v2030, %v2032
  %v2034 = vadd.f32 %v2030, %v2033
  %vm2035 = vweird.f32 %v1996
  %vm2036 = vweird.f32 %v2030
  %vm2037 = vmor %vm2035, %vm2036
  %v2038 = vsel %vm2037, %v2030, %v2034
  %v2039 = vand.u32 2147483647, %v1996
  %vm2040 = vcmp.eq.f32.partialorder %v2039, 8.507059e+37
  %v2041 = vand.u32 %v1996, 2147483648
  %v2042 = vor.u32 1.1754944e-38, %v2041
  %v2043 = vsel %vm2040, %v2042, %v2038
  %v2044 = vmul.f32 %v1978, %v2043
  %v2045 = vrcp.pop %v1999
  %v2046 = vmul.f32 %v1999, %v2045
  %v2047 = vsub.f32 1.0, %v2046
  %v2048 = vmul.f32 %v2045, %v2047
  %v2049 = vadd.f32 %v2045, %v2048
  %vm2050 = vweird.f32 %v1999
  %vm2051 = vweird.f32 %v2045
  %vm2052 = vmor %vm2050, %vm2051
  %v2053 = vsel %vm2052, %v2045, %v2049
  %v2054 = vand.u32 2147483647, %v1999
  %vm2055 = vcmp.eq.f32.partialorder %v2054, 8.507059e+37
  %v2056 = vand.u32 %v1999, 2147483648
  %v2057 = vor.u32 1.1754944e-38, %v2056
  %v2058 = vsel %vm2055, %v2057, %v2053
  %v2059 = vmul.f32 %v1980, %v2058
  %v2060 = vrcp.pop %v2002
  %v2061 = vmul.f32 %v2002, %v2060
  %v2062 = vsub.f32 1.0, %v2061
  %v2063 = vmul.f32 %v2060, %v2062
  %v2064 = vadd.f32 %v2060, %v2063
  %vm2065 = vweird.f32 %v2002
  %vm2066 = vweird.f32 %v2060
  %vm2067 = vmor %vm2065, %vm2066
  %v2068 = vsel %vm2067, %v2060, %v2064
  %v2069 = vand.u32 2147483647, %v2002
  %vm2070 = vcmp.eq.f32.partialorder %v2069, 8.507059e+37
  %v2071 = vand.u32 %v2002, 2147483648
  %v2072 = vor.u32 1.1754944e-38, %v2071
  %v2073 = vsel %vm2070, %v2072, %v2068
  %v2074 = vmul.f32 %v1982, %v2073
  %v2075 = vrcp.pop %v2005
  %v2076 = vmul.f32 %v2005, %v2075
  %v2077 = vsub.f32 1.0, %v2076
  %v2078 = vmul.f32 %v2075, %v2077
  %v2079 = vadd.f32 %v2075, %v2078
  %vm2080 = vweird.f32 %v2005
  %vm2081 = vweird.f32 %v2075
  %vm2082 = vmor %vm2080, %vm2081
  %v2083 = vsel %vm2082, %v2075, %v2079
  %v2084 = vand.u32 2147483647, %v2005
  %vm2085 = vcmp.eq.f32.partialorder %v2084, 8.507059e+37
  %v2086 = vand.u32 %v2005, 2147483648
  %v2087 = vor.u32 1.1754944e-38, %v2086
  %v2088 = vsel %vm2085, %v2087, %v2083
  %v2089 = vmul.f32 %v1984, %v2088
  %v2090 = vrcp.pop %v2008
  %v2091 = vmul.f32 %v2008, %v2090
  %v2092 = vsub.f32 1.0, %v2091
  %v2093 = vmul.f32 %v2090, %v2092
  %v2094 = vadd.f32 %v2090, %v2093
  %vm2095 = vweird.f32 %v2008
  %vm2096 = vweird.f32 %v2090
  %vm2097 = vmor %vm2095, %vm2096
  %v2098 = vsel %vm2097, %v2090, %v2094
  %v2099 = vand.u32 2147483647, %v2008
  %vm2100 = vcmp.eq.f32.partialorder %v2099, 8.507059e+37
  %v2101 = vand.u32 %v2008, 2147483648
  %v2102 = vor.u32 1.1754944e-38, %v2101
  %v2103 = vsel %vm2100, %v2102, %v2098
  %v2104 = vmul.f32 %v1986, %v2103
  %v2105 = vrcp.pop %v2011
  %v2106 = vmul.f32 %v2011, %v2105
  %v2107 = vsub.f32 1.0, %v2106
  %v2108 = vmul.f32 %v2105, %v2107
  %v2109 = vadd.f32 %v2105, %v2108
  %vm2110 = vweird.f32 %v2011
  %vm2111 = vweird.f32 %v2105
  %vm2112 = vmor %vm2110, %vm2111
  %v2113 = vsel %vm2112, %v2105, %v2109
  %v2114 = vand.u32 2147483647, %v2011
  %vm2115 = vcmp.eq.f32.partialorder %v2114, 8.507059e+37
  %v2116 = vand.u32 %v2011, 2147483648
  %v2117 = vor.u32 1.1754944e-38, %v2116
  %v2118 = vsel %vm2115, %v2117, %v2113
  %v2119 = vmul.f32 %v1988, %v2118
  %v2120 = vrcp.pop %v2014
  %v2121 = vmul.f32 %v2014, %v2120
  %v2122 = vsub.f32 1.0, %v2121
  %v2123 = vmul.f32 %v2120, %v2122
  %v2124 = vadd.f32 %v2120, %v2123
  %vm2125 = vweird.f32 %v2014
  %vm2126 = vweird.f32 %v2120
  %vm2127 = vmor %vm2125, %vm2126
  %v2128 = vsel %vm2127, %v2120, %v2124
  %v2129 = vand.u32 2147483647, %v2014
  %vm2130 = vcmp.eq.f32.partialorder %v2129, 8.507059e+37
  %v2131 = vand.u32 %v2014, 2147483648
  %v2132 = vor.u32 1.1754944e-38, %v2131
  %v2133 = vsel %vm2130, %v2132, %v2128
  %v2134 = vmul.f32 %v1990, %v2133
  %v2136 = vsel %vm470, %v2029, 0
  %v2139 = vsel %vm470, %v2044, 0
  %v2142 = vsel %vm470, %v2059, 0
  %v2145 = vsel %vm470, %v2074, 0
  %v2148 = vsel %vm470, %v2089, 0
  %v2151 = vsel %vm470, %v2104, 0
  %v2154 = vsel %vm470, %v2119, 0
  %v2157 = vsel %vm470, %v2134, 0
  %2159 = vmatpush.msra.mxu0 0.0
  %2160 = vmatpush.msra.mxu0 0.0
  %2161 = vmatpush.msra.mxu0 0.0
  %2162 = vmatpush.msra.mxu0 0.0
  %2163 = vmatpush.msra.mxu0 0.0
  %2164 = vmatpush.msra.mxu0 0.0
  %2165 = vmatpush.msra.mxu0 0.0
  %2166 = vmatpush.msra.mxu0 0.0
  %2167 = vmatpush.msra.mxu0 %v1289
  %2168 = vmatpush.msra.mxu0 %v1286
  %2169 = vmatpush.msra.mxu0 %v1283
  %2170 = vmatpush.msra.mxu0 %v1280
  %2171 = vmatpush.msra.mxu0 %v1277
  %2172 = vmatpush.msra.mxu0 %v1274
  %2173 = vmatpush.msra.mxu0 %v1271
  %2174 = vmatpush.msra.mxu0 %v1268
  %2175 = vmatmul.f32.gmra.mxu0 %v2136
  %v2176 = vpop.f32.mrf.mxu0
  %v2177 = vadd.f32 0.0, %v2176
  %2178 = vmatmul.f32.gmra.mxu0 %v2139
  %v2179 = vpop.f32.mrf.mxu0
  %v2180 = vadd.f32 0.0, %v2179
  %2181 = vmatmul.f32.gmra.mxu0 %v2142
  %v2182 = vpop.f32.mrf.mxu0
  %v2183 = vadd.f32 0.0, %v2182
  %2184 = vmatmul.f32.gmra.mxu0 %v2145
  %v2185 = vpop.f32.mrf.mxu0
  %v2186 = vadd.f32 0.0, %v2185
  %2187 = vmatmul.f32.gmra.mxu0 %v2148
  %v2188 = vpop.f32.mrf.mxu0
  %v2189 = vadd.f32 0.0, %v2188
  %2190 = vmatmul.f32.gmra.mxu0 %v2151
  %v2191 = vpop.f32.mrf.mxu0
  %v2192 = vadd.f32 0.0, %v2191
  %2193 = vmatmul.f32.gmra.mxu0 %v2154
  %v2194 = vpop.f32.mrf.mxu0
  %v2195 = vadd.f32 0.0, %v2194
  %2196 = vmatmul.f32.gmra.mxu0 %v2157
  %v2197 = vpop.f32.mrf.mxu0
  %v2198 = vadd.f32 0.0, %v2197
  %2199 = vdwg.mxu0
  %2200 = vst.msk [vmem:[%s6 + $0x40] sm:$0xff] %vm219, %v2177
  %2201 = vst.msk [vmem:[%s6 + $0x48] sm:$0xff] %vm219, %v2180
  %2202 = vst.msk [vmem:[%s6 + $0x50] sm:$0xff] %vm219, %v2183
  %2203 = vst.msk [vmem:[%s6 + $0x58] sm:$0xff] %vm219, %v2186
  %2204 = vst.msk [vmem:[%s6 + $0x60] sm:$0xff] %vm219, %v2189
  %2205 = vst.msk [vmem:[%s6 + $0x68] sm:$0xff] %vm219, %v2192
  %2206 = vst.msk [vmem:[%s6 + $0x70] sm:$0xff] %vm219, %v2195
  %2207 = vst.msk [vmem:[%s6 + $0x78] sm:$0xff] %vm219, %v2198
  // Predicated region
  $region26: #{tpu_custom_call.1} parent=0 // pred_check
    _
  $region27: #{tpu_custom_call.1} parent=0 // pred_check_branch
    %2209 = sbr.rel (0) target = $region29
  $region28: #{tpu_custom_call.1} parent=0 // pred_region
    _
  $region29: #{tpu_custom_call.1} parent=0 // pred_fallthru
    _
  // Predicated region
  $region30: #{tpu_custom_call.1} parent=0 // pred_check
    _
  $region31: #{tpu_custom_call.1} parent=0 // pred_check_branch
    %2211 = sbr.rel (0) target = $region33
  $region32: #{tpu_custom_call.1} parent=0 // pred_region
    _
  $region33: #{tpu_custom_call.1} parent=0 // pred_fallthru
    _

</llo_original>
